<compile_context>
chip_gen: v7x
topology: tpu7x:2x2x1
jax: 0.10.0
libtpu: 0.0.40
codegen_flags: <defaults>
</compile_context>

<pallas_src>
import jax
import jax.numpy as jnp
from jax import lax
from jax.experimental import pallas as pl
from jax.experimental.pallas import tpu as pltpu

LANE = 128
SUBLANE = 8


def _round_up(x, m):
    return (x + m - 1) // m * m


def sentiment_lstm_kernel(emb_ref,              # (TS*Bp, E)   bf16, rows (t, b)
                          h0_ref, c0_ref,       # (Bp, Hp)     f32
                          w_ih_ref,             # (E, 4*Hp)    bf16
                          w_hh_ref,             # (Hp, 4*Hp)   bf16
                          b_ref,                # (1, 4*Hp)    f32 (b_ih + b_hh)
                          sel_ref,              # (Hp, Hp)     f32 pool selector
                          w_fc_ref,             # (Hp//4, OUT_PAD) f32
                          b_fc_ref,             # (1, OUT_PAD) f32
                          dense_ref,            # (TS*Bp, OUT_PAD) rows (t, b)
                          hn_ref, cn_ref,       # (Bp, Hp)     resident carry
                          gx_ref,               # (TS*Bp, 4*Hp) VMEM scratch
                          hbuf_ref):            # (TS*Bp, Hp)   VMEM scratch
    Bp, Hp = h0_ref.shape
    TS = emb_ref.shape[0] // Bp
    P = Hp // 4

    # Initialize the resident carry from h0/c0 on the first time-chunk.
    @pl.when(pl.program_id(0) == 0)
    def _():
        hn_ref[...] = h0_ref[...]
        cn_ref[...] = c0_ref[...]

    # Input projection hoisted out of the recurrence: one tall bf16 MXU matmul
    # per chunk (f32 accumulate) with the fused bias folded in.  Parked in a
    # VMEM scratch so the (TS*Bp, 4*Hp) value does not inflate vreg pressure
    # across the serial loop.
    gx_ref[...] = (jnp.dot(emb_ref[...], w_ih_ref[...],
                           preferred_element_type=jnp.float32)
                   + b_ref[...])

    w_hh = w_hh_ref[...]                      # bf16, VMEM-resident

    def step(t, carry):
        h, c = carry
        r0 = pl.multiple_of(t * Bp, Bp)       # 8-sublane-aligned row offset
        gates = gx_ref[pl.ds(r0, Bp), :] + jnp.dot(
            h.astype(jnp.bfloat16), w_hh, preferred_element_type=jnp.float32)
        # Gate order [i, f, o, g]: sigmoid only over the contiguous first
        # 3*Hp lanes, tanh only over the last Hp lanes.  Every slice below is
        # 128-lane aligned (Hp is a multiple of 128) -> free vreg slices.
        sg = jax.nn.sigmoid(gates[:, :3 * Hp])
        i = sg[:, 0 * Hp:1 * Hp]
        f = sg[:, 1 * Hp:2 * Hp]
        o = sg[:, 2 * Hp:3 * Hp]
        g = jnp.tanh(gates[:, 3 * Hp:])
        c = f * c + i * g
        h = o * jnp.tanh(c)
        hbuf_ref[pl.ds(r0, Bp), :] = h        # unmasked, aligned store
        return h, c

    h, c = lax.fori_loop(0, TS, step, (hn_ref[...], cn_ref[...]),
                         unroll=min(TS, 8))
    hn_ref[...] = h
    cn_ref[...] = c

    # TODO(synk): nn.Dropout(0.3) is identity in eval mode; no mask applied.
    # Epilogue (once per chunk): MaxPool1d(4) over the hidden axis via ONE
    # precomputed selection matmul + a 4-way lane-group max, then the FC
    # matmul and a single lane-dense (128-wide) store.
    h2d = hbuf_ref[...]                                          # (TS*Bp, Hp)
    picks = jnp.dot(h2d, sel_ref[...],
                    preferred_element_type=jnp.float32)          # (TS*Bp, Hp)
    pooled = jnp.maximum(
        jnp.maximum(picks[:, 0:P], picks[:, P:2 * P]),
        jnp.maximum(picks[:, 2 * P:3 * P], picks[:, 3 * P:4 * P]))
    dense_ref[...] = (jnp.dot(pooled, w_fc_ref[...],
                              preferred_element_type=jnp.float32)
                      + b_fc_ref[...])


def prepare_params(raw, out_pad):
    """PyTorch-layout params -> kernel layout (gate reorder, padding, bf16)."""
    H = raw["w_hh"].shape[1]
    Hp = _round_up(H, LANE)
    out_dim = raw["w_fc"].shape[0]
    P = Hp // 4

    def gate_blocks(w):
        # PyTorch gate order [i, f, g, o] -> kernel order [i, f, o, g].
        i, f, g, o = jnp.split(w, 4, axis=0)
        return [i, f, o, g]

    def pack_cols(blocks):
        # list of (in_dim, H) -> (in_dim, 4*Hp); each gate block padded to Hp
        # so every gate starts on a 128-lane boundary.
        return jnp.concatenate(
            [jnp.pad(blk, ((0, 0), (0, Hp - H))) for blk in blocks], axis=1)

    w_ih = pack_cols([blk.T for blk in gate_blocks(raw["w_ih"])])       # (E, 4Hp)
    w_hh = pack_cols([jnp.pad(blk.T, ((0, Hp - H), (0, 0)))
                      for blk in gate_blocks(raw["w_hh"])])             # (Hp, 4Hp)
    b = pack_cols([blk[None, :]
                   for blk in gate_blocks(raw["b_ih"] + raw["b_hh"])])  # (1, 4Hp)

    # MaxPool1d(4) selection: 0/1 matrix whose k-th P-wide column group picks
    # hidden lane 4*c + k.  One matmul + 4-way max in the kernel (exact).
    r = jnp.arange(Hp)[:, None]
    cols = jnp.arange(Hp)[None, :]
    sel = (r == 4 * (cols % P) + cols // P).astype(jnp.float32)         # (Hp, Hp)

    w_fc = jnp.pad(raw["w_fc"].T,
                   ((0, P - H // 4), (0, out_pad - out_dim)))           # (P, out_pad)
    b_fc = jnp.pad(raw["b_fc"][None, :], ((0, 0), (0, out_pad - out_dim)))

    return dict(
        embedding=raw["embedding"].astype(jnp.bfloat16),
        w_ih=w_ih.astype(jnp.bfloat16),
        w_hh=w_hh.astype(jnp.bfloat16),
        b=b, sel=sel, w_fc=w_fc, b_fc=b_fc,
    )


def sentiment_lstm_forward(text, hidden, raw_params, *, time_chunk=None):
    """Equivalent of SentimentLSTM.forward(text, hidden) (eval mode)."""
    h0, c0 = hidden                      # each (n_layers, B, H)
    assert h0.shape[0] == 1, "kernel supports n_layers=1, unidirectional"
    B, S = text.shape
    H = raw_params["w_hh"].shape[1]
    E = raw_params["embedding"].shape[1]
    out_dim = raw_params["w_fc"].shape[0]
    assert H % 4 == 0

    Hp = _round_up(H, LANE)              # 128-aligned hidden width
    OUT_PAD = _round_up(out_dim, LANE)   # lane-dense output width
    Bp = _round_up(max(B, SUBLANE), SUBLANE)
    P = Hp // 4

    p = prepare_params(raw_params, OUT_PAD)

    if time_chunk is None:
        time_chunk = S
    assert S % time_chunk == 0
    n_chunks = S // time_chunk
    TSB = time_chunk * Bp                # always a multiple of 8

    # Embedding gather done with TIME-MAJOR ids so the big (S*Bp, E) tensor is
    # produced directly in kernel row order (no XLA transpose of the embedded
    # activations); bf16 table halves the streamed HBM traffic.
    # TODO(synk): a fully in-kernel row-gather (ids via scalar prefetch +
    # manual DMA from the table left in HBM) would remove the XLA gather's
    # extra S*B*E write+read entirely.
    text_p = jnp.pad(text, ((0, Bp - B), (0, 0)))
    ids_tm = text_p.T.reshape(-1)                        # (S*Bp,), rows (t, b)
    emb2d = p["embedding"][ids_tm]                       # (S*Bp, E) bf16

    h0p = jnp.pad(h0[0], ((0, Bp - B), (0, Hp - H)))
    c0p = jnp.pad(c0[0], ((0, Bp - B), (0, Hp - H)))

    const2d = lambda t: (0, 0)
    # NOTE: for large shapes set pltpu.CompilerParams(vmem_limit_bytes=...)
    # per generation (v7x has 64 MiB physical VMEM vs 128 MiB on v5e/v6e) and
    # pick time_chunk accordingly; defaults are ample at these sizes.
    dense2d, hn, cn = pl.pallas_call(
        sentiment_lstm_kernel,
        out_shape=(
            jax.ShapeDtypeStruct((S * Bp, OUT_PAD), jnp.float32),
            jax.ShapeDtypeStruct((Bp, Hp), jnp.float32),
            jax.ShapeDtypeStruct((Bp, Hp), jnp.float32),
        ),
        grid_spec=pltpu.PrefetchScalarGridSpec(
            num_scalar_prefetch=0,
            grid=(n_chunks,),
            in_specs=[
                pl.BlockSpec((TSB, E), lambda t: (t, 0)),        # emb chunk
                pl.BlockSpec((Bp, Hp), const2d),                 # h0
                pl.BlockSpec((Bp, Hp), const2d),                 # c0
                pl.BlockSpec((E, 4 * Hp), const2d),              # w_ih
                pl.BlockSpec((Hp, 4 * Hp), const2d),             # w_hh
                pl.BlockSpec((1, 4 * Hp), const2d),              # b
                pl.BlockSpec((Hp, Hp), const2d),                 # pool selector
                pl.BlockSpec((P, OUT_PAD), const2d),             # w_fc
                pl.BlockSpec((1, OUT_PAD), const2d),             # b_fc
            ],
            out_specs=(
                pl.BlockSpec((TSB, OUT_PAD), lambda t: (t, 0)),  # dense chunk
                pl.BlockSpec((Bp, Hp), const2d),                 # hn (carry)
                pl.BlockSpec((Bp, Hp), const2d),                 # cn (carry)
            ),
            scratch_shapes=[
                pltpu.VMEM((TSB, 4 * Hp), jnp.float32),          # gx
                pltpu.VMEM((TSB, Hp), jnp.float32),              # hbuf
            ],
        ),
        compiler_params=pltpu.CompilerParams(
            dimension_semantics=("arbitrary",)),
    )(emb2d, h0p, c0p, p["w_ih"], p["w_hh"], p["b"], p["sel"],
      p["w_fc"], p["b_fc"])

    # Kernel rows are ordered (t, b); PyTorch's batch_first `.view(-1, H//4)`
    # orders rows (b, t) -> reorder in the wrapper (tiny), dropping the batch
    # and output-lane padding.
    dense = jnp.transpose(
        dense2d.reshape(S, Bp, OUT_PAD)[:, :B, :out_dim],
        (1, 0, 2)).reshape(B * S, out_dim)
    hn = hn[:B, :H][None]
    cn = cn[:B, :H][None]
    return dense, (hn, cn)


def reference_forward(text, hidden, raw, hidden_dim):
    """Pure-JAX reference with PyTorch layout/gate order (f32 throughout)."""
    h, c = hidden[0][0], hidden[1][0]
    emb = raw["embedding"][text]
    B, S, _ = emb.shape
    H = hidden_dim
    w_ih_T, w_hh_T = raw["w_ih"].T, raw["w_hh"].T
    b = raw["b_ih"] + raw["b_hh"]
    outs = []
    for t in range(S):
        x = emb[:, t, :]
        gates = x @ w_ih_T + h @ w_hh_T + b
        i = jax.nn.sigmoid(gates[:, :H])
        f = jax.nn.sigmoid(gates[:, H:2 * H])
        g = jnp.tanh(gates[:, 2 * H:3 * H])
        o = jax.nn.sigmoid(gates[:, 3 * H:])
        c = f * c + i * g
        h = o * jnp.tanh(c)
        outs.append(h)
    lstm_out = jnp.stack(outs, axis=1)                      # (B, S, H)
    pooled = lstm_out.reshape(B, S, H // 4, 4).max(-1)      # MaxPool1d(4)
    dense = pooled.reshape(-1, H // 4) @ raw["w_fc"].T + raw["b_fc"]
    return dense, (h[None], c[None])


def init_params(key, vocab_size, embedding_dim, hidden_dim, output_size):
    """Raw params in PyTorch layout (gate order [i, f, g, o])."""
    ks = jax.random.split(key, 7)
    s = 0.1
    return dict(
        embedding=jax.random.normal(ks[0], (vocab_size, embedding_dim), jnp.float32) * s,
        w_ih=jax.random.normal(ks[1], (4 * hidden_dim, embedding_dim), jnp.float32) * s,
        w_hh=jax.random.normal(ks[2], (4 * hidden_dim, hidden_dim), jnp.float32) * s,
        b_ih=jax.random.normal(ks[3], (4 * hidden_dim,), jnp.float32) * s,
        b_hh=jax.random.normal(ks[4], (4 * hidden_dim,), jnp.float32) * s,
        w_fc=jax.random.normal(ks[5], (output_size, hidden_dim // 4), jnp.float32) * s,
        b_fc=jax.random.normal(ks[6], (output_size,), jnp.float32) * s,
    )


if __name__ == "__main__":
    VOCAB, OUT, EMB, HID, LAYERS, BATCH, SEQ = 50, 2, 16, 32, 1, 2, 8

    key = jax.random.PRNGKey(0)
    k_param, k_text = jax.random.split(key)
    raw = init_params(k_param, VOCAB, EMB, HID, OUT)

    text = jax.random.randint(k_text, (BATCH, SEQ), 0, VOCAB, dtype=jnp.int32)
    # init_hidden(batch_size): zeros of shape (n_layers, B, H) (unidirectional)
    h0 = jnp.zeros((LAYERS, BATCH, HID), jnp.float32)
    c0 = jnp.zeros((LAYERS, BATCH, HID), jnp.float32)

    # time_chunk=4 -> grid=(2,): exercises the chunked grid + resident h/c carry.
    dense, (hn, cn) = sentiment_lstm_forward(text, (h0, c0), raw, time_chunk=4)
    jax.block_until_ready((dense, hn, cn))

    dense_ref, (hn_ref, cn_ref) = reference_forward(text, (h0, c0), raw, HID)
    assert dense.shape == (BATCH * SEQ, OUT)
    assert hn.shape == (LAYERS, BATCH, HID) and cn.shape == (LAYERS, BATCH, HID)
    # bf16 MXU inputs (embedding / w_ih / w_hh) -> slightly looser tolerance
    # than the pure-f32 reference.
    assert jnp.allclose(dense, dense_ref, atol=1e-2, rtol=1e-2)
    assert jnp.allclose(hn, hn_ref, atol=1e-2, rtol=1e-2)
    assert jnp.allclose(cn, cn_ref, atol=1e-2, rtol=1e-2)

    print("KERNEL_OK")
</pallas_src>

<mosaic_0001>
module attributes {stable_mosaic.version = 11 : i64} {
  func.func @sentiment_lstm_kernel(%arg0: i32, %arg1: memref<32x16xbf16, #tpu.memory_space<vmem>>, %arg2: memref<8x128xf32, #tpu.memory_space<vmem>>, %arg3: memref<8x128xf32, #tpu.memory_space<vmem>>, %arg4: memref<16x512xbf16, #tpu.memory_space<vmem>>, %arg5: memref<128x512xbf16, #tpu.memory_space<vmem>>, %arg6: memref<1x512xf32, #tpu.memory_space<vmem>>, %arg7: memref<128x128xf32, #tpu.memory_space<vmem>>, %arg8: memref<32x128xf32, #tpu.memory_space<vmem>>, %arg9: memref<1x128xf32, #tpu.memory_space<vmem>>, %arg10: memref<32x128xf32, #tpu.memory_space<vmem>>, %arg11: memref<8x128xf32, #tpu.memory_space<vmem>>, %arg12: memref<8x128xf32, #tpu.memory_space<vmem>>, %arg13: memref<32x512xf32, #tpu.memory_space<vmem>>, %arg14: memref<32x128xf32, #tpu.memory_space<vmem>>) attributes {dimension_semantics = [#tpu.dimension_semantics<arbitrary>], iteration_bounds = array<i64: 2>, scalar_prefetch = 0 : i64, scratch_operands = 2 : i64, tpu.core_type = #tpu.core_type<tc>, window_params = [{transform_indices = @transform_0, window_bounds = array<i64: 32, 16>}, {pipeline_mode = #tpu.pipeline_mode<synchronous>, transform_indices = @transform_1, window_bounds = array<i64: 8, 128>}, {pipeline_mode = #tpu.pipeline_mode<synchronous>, transform_indices = @transform_2, window_bounds = array<i64: 8, 128>}, {pipeline_mode = #tpu.pipeline_mode<synchronous>, transform_indices = @transform_3, window_bounds = array<i64: 16, 512>}, {pipeline_mode = #tpu.pipeline_mode<synchronous>, transform_indices = @transform_4, window_bounds = array<i64: 128, 512>}, {pipeline_mode = #tpu.pipeline_mode<synchronous>, transform_indices = @transform_5, window_bounds = array<i64: 1, 512>}, {pipeline_mode = #tpu.pipeline_mode<synchronous>, transform_indices = @transform_6, window_bounds = array<i64: 128, 128>}, {pipeline_mode = #tpu.pipeline_mode<synchronous>, transform_indices = @transform_7, window_bounds = array<i64: 32, 128>}, {pipeline_mode = #tpu.pipeline_mode<synchronous>, transform_indices = @transform_8, window_bounds = array<i64: 1, 128>}, {transform_indices = @transform_9, window_bounds = array<i64: 32, 128>}, {pipeline_mode = #tpu.pipeline_mode<synchronous>, transform_indices = @transform_10, window_bounds = array<i64: 8, 128>}, {pipeline_mode = #tpu.pipeline_mode<synchronous>, transform_indices = @transform_11, window_bounds = array<i64: 8, 128>}]} {
    %c0_i32 = arith.constant 0 : i32
    %0 = arith.cmpi eq, %arg0, %c0_i32 : i32
    %1 = arith.extui %0 : i1 to i32
    %c0_i32_0 = arith.constant 0 : i32
    %2 = arith.cmpi ne, %1, %c0_i32_0 : i32
    scf.if %2 {
      %c0_50 = arith.constant 0 : index
      %c0_51 = arith.constant 0 : index
      %131 = vector.load %arg2[%c0_50, %c0_51] : memref<8x128xf32, #tpu.memory_space<vmem>>, vector<8x128xf32>
      %c0_52 = arith.constant 0 : index
      %c0_53 = arith.constant 0 : index
      %132 = vector.load %arg11[%c0_52, %c0_53] : memref<8x128xf32, #tpu.memory_space<vmem>>, vector<8x128xf32>
      tpu.vector_store %arg11[%c0_52, %c0_53], %131 {strides = array<i32>} : memref<8x128xf32, #tpu.memory_space<vmem>>, vector<8x128xf32>,
      %c0_54 = arith.constant 0 : index
      %c0_55 = arith.constant 0 : index
      %133 = vector.load %arg3[%c0_54, %c0_55] : memref<8x128xf32, #tpu.memory_space<vmem>>, vector<8x128xf32>
      %c0_56 = arith.constant 0 : index
      %c0_57 = arith.constant 0 : index
      %134 = vector.load %arg12[%c0_56, %c0_57] : memref<8x128xf32, #tpu.memory_space<vmem>>, vector<8x128xf32>
      tpu.vector_store %arg12[%c0_56, %c0_57], %133 {strides = array<i32>} : memref<8x128xf32, #tpu.memory_space<vmem>>, vector<8x128xf32>,
    } else {
    }
    %c0 = arith.constant 0 : index
    %c0_1 = arith.constant 0 : index
    %3 = vector.load %arg1[%c0, %c0_1] : memref<32x16xbf16, #tpu.memory_space<vmem>>, vector<32x16xbf16>
    %c0_2 = arith.constant 0 : index
    %c0_3 = arith.constant 0 : index
    %4 = vector.load %arg4[%c0_2, %c0_3] : memref<16x512xbf16, #tpu.memory_space<vmem>>, vector<16x512xbf16>
    %cst = arith.constant dense<0.000000e+00> : vector<32x512xf32>
    %5 = tpu.matmul %3, %4, %cst {dimension_numbers = #tpu.dot_dimension_numbers<[1], [0], [0], [1], [0, 0, 1, 1], [], []>} : vector<32x16xbf16>, vector<16x512xbf16>, vector<32x512xf32> -> vector<32x512xf32>
    %c0_4 = arith.constant 0 : index
    %c0_5 = arith.constant 0 : index
    %6 = vector.load %arg6[%c0_4, %c0_5] : memref<1x512xf32, #tpu.memory_space<vmem>>, vector<1x512xf32>
    %7 = vector.broadcast %6 : vector<1x512xf32> to vector<32x512xf32>
    %8 = arith.addf %5, %7 : vector<32x512xf32>
    %c0_6 = arith.constant 0 : index
    %c0_7 = arith.constant 0 : index
    %9 = vector.load %arg13[%c0_6, %c0_7] : memref<32x512xf32, #tpu.memory_space<vmem>>, vector<32x512xf32>
    tpu.vector_store %arg13[%c0_6, %c0_7], %8 {strides = array<i32>} : memref<32x512xf32, #tpu.memory_space<vmem>>, vector<32x512xf32>,
    %c0_8 = arith.constant 0 : index
    %c0_9 = arith.constant 0 : index
    %10 = vector.load %arg5[%c0_8, %c0_9] : memref<128x512xbf16, #tpu.memory_space<vmem>>, vector<128x512xbf16>
    %c0_10 = arith.constant 0 : index
    %c0_11 = arith.constant 0 : index
    %11 = vector.load %arg11[%c0_10, %c0_11] : memref<8x128xf32, #tpu.memory_space<vmem>>, vector<8x128xf32>
    %c0_12 = arith.constant 0 : index
    %c0_13 = arith.constant 0 : index
    %12 = vector.load %arg12[%c0_12, %c0_13] : memref<8x128xf32, #tpu.memory_space<vmem>>, vector<8x128xf32>
    %c0_i32_14 = arith.constant 0 : i32
    %c8_i32 = arith.constant 8 : i32
    %13 = arith.muli %c0_i32_14, %c8_i32 : i32
    %14 = tpu.assume_multiple %13, 8 : i32
    %15 = arith.index_cast %14 : i32 to index
    %c0_15 = arith.constant 0 : index
    %16 = vector.load %arg13[%15, %c0_15] : memref<32x512xf32, #tpu.memory_space<vmem>>, vector<8x512xf32>
    %17 = arith.truncf %11 : vector<8x128xf32> to vector<8x128xbf16>
    %cst_16 = arith.constant dense<0.000000e+00> : vector<8x512xf32>
    %18 = tpu.matmul %17, %10, %cst_16 {dimension_numbers = #tpu.dot_dimension_numbers<[1], [0], [0], [1], [0, 0, 1, 1], [], []>} : vector<8x128xbf16>, vector<128x512xbf16>, vector<8x512xf32> -> vector<8x512xf32>
    %19 = arith.addf %16, %18 : vector<8x512xf32>
    %20 = vector.extract_strided_slice %19 {offsets = [0, 0], sizes = [8, 384], strides = [1, 1]} : vector<8x512xf32> to vector<8x384xf32>
    %21 = arith.negf %20 : vector<8x384xf32>
    %22 = math.exp %21 : vector<8x384xf32>
    %cst_17 = arith.constant 1.000000e+00 : f32
    %23 = vector.broadcast %cst_17 : f32 to vector<8x384xf32>
    %24 = arith.addf %23, %22 : vector<8x384xf32>
    %25 = arith.divf %23, %24 : vector<8x384xf32>
    %26 = vector.extract_strided_slice %25 {offsets = [0, 0], sizes = [8, 128], strides = [1, 1]} : vector<8x384xf32> to vector<8x128xf32>
    %27 = vector.extract_strided_slice %25 {offsets = [0, 128], sizes = [8, 128], strides = [1, 1]} : vector<8x384xf32> to vector<8x128xf32>
    %28 = vector.extract_strided_slice %25 {offsets = [0, 256], sizes = [8, 128], strides = [1, 1]} : vector<8x384xf32> to vector<8x128xf32>
    %29 = vector.extract_strided_slice %19 {offsets = [0, 384], sizes = [8, 128], strides = [1, 1]} : vector<8x512xf32> to vector<8x128xf32>
    %30 = math.tanh %29 : vector<8x128xf32>
    %31 = arith.mulf %27, %12 : vector<8x128xf32>
    %32 = arith.mulf %26, %30 : vector<8x128xf32>
    %33 = arith.addf %31, %32 : vector<8x128xf32>
    %34 = math.tanh %33 : vector<8x128xf32>
    %35 = arith.mulf %28, %34 : vector<8x128xf32>
    %36 = arith.index_cast %14 : i32 to index
    %c0_18 = arith.constant 0 : index
    %37 = vector.load %arg14[%36, %c0_18] : memref<32x128xf32, #tpu.memory_space<vmem>>, vector<8x128xf32>
    tpu.vector_store %arg14[%36, %c0_18], %35 {strides = array<i32>} : memref<32x128xf32, #tpu.memory_space<vmem>>, vector<8x128xf32>,
    %c1_i32 = arith.constant 1 : i32
    %c8_i32_19 = arith.constant 8 : i32
    %38 = arith.muli %c1_i32, %c8_i32_19 : i32
    %39 = tpu.assume_multiple %38, 8 : i32
    %40 = arith.index_cast %39 : i32 to index
    %c0_20 = arith.constant 0 : index
    %41 = vector.load %arg13[%40, %c0_20] : memref<32x512xf32, #tpu.memory_space<vmem>>, vector<8x512xf32>
    %42 = arith.truncf %35 : vector<8x128xf32> to vector<8x128xbf16>
    %cst_21 = arith.constant dense<0.000000e+00> : vector<8x512xf32>
    %43 = tpu.matmul %42, %10, %cst_21 {dimension_numbers = #tpu.dot_dimension_numbers<[1], [0], [0], [1], [0, 0, 1, 1], [], []>} : vector<8x128xbf16>, vector<128x512xbf16>, vector<8x512xf32> -> vector<8x512xf32>
    %44 = arith.addf %41, %43 : vector<8x512xf32>
    %45 = vector.extract_strided_slice %44 {offsets = [0, 0], sizes = [8, 384], strides = [1, 1]} : vector<8x512xf32> to vector<8x384xf32>
    %46 = arith.negf %45 : vector<8x384xf32>
    %47 = math.exp %46 : vector<8x384xf32>
    %cst_22 = arith.constant 1.000000e+00 : f32
    %48 = vector.broadcast %cst_22 : f32 to vector<8x384xf32>
    %49 = arith.addf %48, %47 : vector<8x384xf32>
    %50 = arith.divf %48, %49 : vector<8x384xf32>
    %51 = vector.extract_strided_slice %50 {offsets = [0, 0], sizes = [8, 128], strides = [1, 1]} : vector<8x384xf32> to vector<8x128xf32>
    %52 = vector.extract_strided_slice %50 {offsets = [0, 128], sizes = [8, 128], strides = [1, 1]} : vector<8x384xf32> to vector<8x128xf32>
    %53 = vector.extract_strided_slice %50 {offsets = [0, 256], sizes = [8, 128], strides = [1, 1]} : vector<8x384xf32> to vector<8x128xf32>
    %54 = vector.extract_strided_slice %44 {offsets = [0, 384], sizes = [8, 128], strides = [1, 1]} : vector<8x512xf32> to vector<8x128xf32>
    %55 = math.tanh %54 : vector<8x128xf32>
    %56 = arith.mulf %52, %33 : vector<8x128xf32>
    %57 = arith.mulf %51, %55 : vector<8x128xf32>
    %58 = arith.addf %56, %57 : vector<8x128xf32>
    %59 = math.tanh %58 : vector<8x128xf32>
    %60 = arith.mulf %53, %59 : vector<8x128xf32>
    %61 = arith.index_cast %39 : i32 to index
    %c0_23 = arith.constant 0 : index
    %62 = vector.load %arg14[%61, %c0_23] : memref<32x128xf32, #tpu.memory_space<vmem>>, vector<8x128xf32>
    tpu.vector_store %arg14[%61, %c0_23], %60 {strides = array<i32>} : memref<32x128xf32, #tpu.memory_space<vmem>>, vector<8x128xf32>,
    %c2_i32 = arith.constant 2 : i32
    %c8_i32_24 = arith.constant 8 : i32
    %63 = arith.muli %c2_i32, %c8_i32_24 : i32
    %64 = tpu.assume_multiple %63, 8 : i32
    %65 = arith.index_cast %64 : i32 to index
    %c0_25 = arith.constant 0 : index
    %66 = vector.load %arg13[%65, %c0_25] : memref<32x512xf32, #tpu.memory_space<vmem>>, vector<8x512xf32>
    %67 = arith.truncf %60 : vector<8x128xf32> to vector<8x128xbf16>
    %cst_26 = arith.constant dense<0.000000e+00> : vector<8x512xf32>
    %68 = tpu.matmul %67, %10, %cst_26 {dimension_numbers = #tpu.dot_dimension_numbers<[1], [0], [0], [1], [0, 0, 1, 1], [], []>} : vector<8x128xbf16>, vector<128x512xbf16>, vector<8x512xf32> -> vector<8x512xf32>
    %69 = arith.addf %66, %68 : vector<8x512xf32>
    %70 = vector.extract_strided_slice %69 {offsets = [0, 0], sizes = [8, 384], strides = [1, 1]} : vector<8x512xf32> to vector<8x384xf32>
    %71 = arith.negf %70 : vector<8x384xf32>
    %72 = math.exp %71 : vector<8x384xf32>
    %cst_27 = arith.constant 1.000000e+00 : f32
    %73 = vector.broadcast %cst_27 : f32 to vector<8x384xf32>
    %74 = arith.addf %73, %72 : vector<8x384xf32>
    %75 = arith.divf %73, %74 : vector<8x384xf32>
    %76 = vector.extract_strided_slice %75 {offsets = [0, 0], sizes = [8, 128], strides = [1, 1]} : vector<8x384xf32> to vector<8x128xf32>
    %77 = vector.extract_strided_slice %75 {offsets = [0, 128], sizes = [8, 128], strides = [1, 1]} : vector<8x384xf32> to vector<8x128xf32>
    %78 = vector.extract_strided_slice %75 {offsets = [0, 256], sizes = [8, 128], strides = [1, 1]} : vector<8x384xf32> to vector<8x128xf32>
    %79 = vector.extract_strided_slice %69 {offsets = [0, 384], sizes = [8, 128], strides = [1, 1]} : vector<8x512xf32> to vector<8x128xf32>
    %80 = math.tanh %79 : vector<8x128xf32>
    %81 = arith.mulf %77, %58 : vector<8x128xf32>
    %82 = arith.mulf %76, %80 : vector<8x128xf32>
    %83 = arith.addf %81, %82 : vector<8x128xf32>
    %84 = math.tanh %83 : vector<8x128xf32>
    %85 = arith.mulf %78, %84 : vector<8x128xf32>
    %86 = arith.index_cast %64 : i32 to index
    %c0_28 = arith.constant 0 : index
    %87 = vector.load %arg14[%86, %c0_28] : memref<32x128xf32, #tpu.memory_space<vmem>>, vector<8x128xf32>
    tpu.vector_store %arg14[%86, %c0_28], %85 {strides = array<i32>} : memref<32x128xf32, #tpu.memory_space<vmem>>, vector<8x128xf32>,
    %c3_i32 = arith.constant 3 : i32
    %c8_i32_29 = arith.constant 8 : i32
    %88 = arith.muli %c3_i32, %c8_i32_29 : i32
    %89 = tpu.assume_multiple %88, 8 : i32
    %90 = arith.index_cast %89 : i32 to index
    %c0_30 = arith.constant 0 : index
    %91 = vector.load %arg13[%90, %c0_30] : memref<32x512xf32, #tpu.memory_space<vmem>>, vector<8x512xf32>
    %92 = arith.truncf %85 : vector<8x128xf32> to vector<8x128xbf16>
    %cst_31 = arith.constant dense<0.000000e+00> : vector<8x512xf32>
    %93 = tpu.matmul %92, %10, %cst_31 {dimension_numbers = #tpu.dot_dimension_numbers<[1], [0], [0], [1], [0, 0, 1, 1], [], []>} : vector<8x128xbf16>, vector<128x512xbf16>, vector<8x512xf32> -> vector<8x512xf32>
    %94 = arith.addf %91, %93 : vector<8x512xf32>
    %95 = vector.extract_strided_slice %94 {offsets = [0, 0], sizes = [8, 384], strides = [1, 1]} : vector<8x512xf32> to vector<8x384xf32>
    %96 = arith.negf %95 : vector<8x384xf32>
    %97 = math.exp %96 : vector<8x384xf32>
    %cst_32 = arith.constant 1.000000e+00 : f32
    %98 = vector.broadcast %cst_32 : f32 to vector<8x384xf32>
    %99 = arith.addf %98, %97 : vector<8x384xf32>
    %100 = arith.divf %98, %99 : vector<8x384xf32>
    %101 = vector.extract_strided_slice %100 {offsets = [0, 0], sizes = [8, 128], strides = [1, 1]} : vector<8x384xf32> to vector<8x128xf32>
    %102 = vector.extract_strided_slice %100 {offsets = [0, 128], sizes = [8, 128], strides = [1, 1]} : vector<8x384xf32> to vector<8x128xf32>
    %103 = vector.extract_strided_slice %100 {offsets = [0, 256], sizes = [8, 128], strides = [1, 1]} : vector<8x384xf32> to vector<8x128xf32>
    %104 = vector.extract_strided_slice %94 {offsets = [0, 384], sizes = [8, 128], strides = [1, 1]} : vector<8x512xf32> to vector<8x128xf32>
    %105 = math.tanh %104 : vector<8x128xf32>
    %106 = arith.mulf %102, %83 : vector<8x128xf32>
    %107 = arith.mulf %101, %105 : vector<8x128xf32>
    %108 = arith.addf %106, %107 : vector<8x128xf32>
    %109 = math.tanh %108 : vector<8x128xf32>
    %110 = arith.mulf %103, %109 : vector<8x128xf32>
    %111 = arith.index_cast %89 : i32 to index
    %c0_33 = arith.constant 0 : index
    %112 = vector.load %arg14[%111, %c0_33] : memref<32x128xf32, #tpu.memory_space<vmem>>, vector<8x128xf32>
    tpu.vector_store %arg14[%111, %c0_33], %110 {strides = array<i32>} : memref<32x128xf32, #tpu.memory_space<vmem>>, vector<8x128xf32>,
    %c4_i32 = arith.constant 4 : i32
    %c0_34 = arith.constant 0 : index
    %c0_35 = arith.constant 0 : index
    %113 = vector.load %arg11[%c0_34, %c0_35] : memref<8x128xf32, #tpu.memory_space<vmem>>, vector<8x128xf32>
    tpu.vector_store %arg11[%c0_34, %c0_35], %110 {strides = array<i32>} : memref<8x128xf32, #tpu.memory_space<vmem>>, vector<8x128xf32>,
    %c0_36 = arith.constant 0 : index
    %c0_37 = arith.constant 0 : index
    %114 = vector.load %arg12[%c0_36, %c0_37] : memref<8x128xf32, #tpu.memory_space<vmem>>, vector<8x128xf32>
    tpu.vector_store %arg12[%c0_36, %c0_37], %108 {strides = array<i32>} : memref<8x128xf32, #tpu.memory_space<vmem>>, vector<8x128xf32>,
    %c0_38 = arith.constant 0 : index
    %c0_39 = arith.constant 0 : index
    %115 = vector.load %arg14[%c0_38, %c0_39] : memref<32x128xf32, #tpu.memory_space<vmem>>, vector<32x128xf32>
    %c0_40 = arith.constant 0 : index
    %c0_41 = arith.constant 0 : index
    %116 = vector.load %arg7[%c0_40, %c0_41] : memref<128x128xf32, #tpu.memory_space<vmem>>, vector<128x128xf32>
    %cst_42 = arith.constant dense<0.000000e+00> : vector<32x128xf32>
    %117 = tpu.matmul %115, %116, %cst_42 {dimension_numbers = #tpu.dot_dimension_numbers<[1], [0], [0], [1], [0, 0, 1, 1], [], []>} : vector<32x128xf32>, vector<128x128xf32>, vector<32x128xf32> -> vector<32x128xf32>
    %118 = vector.extract_strided_slice %117 {offsets = [0, 0], sizes = [32, 32], strides = [1, 1]} : vector<32x128xf32> to vector<32x32xf32>
    %119 = vector.extract_strided_slice %117 {offsets = [0, 32], sizes = [32, 32], strides = [1, 1]} : vector<32x128xf32> to vector<32x32xf32>
    %120 = arith.maximumf %118, %119 : vector<32x32xf32>
    %121 = vector.extract_strided_slice %117 {offsets = [0, 64], sizes = [32, 32], strides = [1, 1]} : vector<32x128xf32> to vector<32x32xf32>
    %122 = vector.extract_strided_slice %117 {offsets = [0, 96], sizes = [32, 32], strides = [1, 1]} : vector<32x128xf32> to vector<32x32xf32>
    %123 = arith.maximumf %121, %122 : vector<32x32xf32>
    %124 = arith.maximumf %120, %123 : vector<32x32xf32>
    %c0_43 = arith.constant 0 : index
    %c0_44 = arith.constant 0 : index
    %125 = vector.load %arg8[%c0_43, %c0_44] : memref<32x128xf32, #tpu.memory_space<vmem>>, vector<32x128xf32>
    %cst_45 = arith.constant dense<0.000000e+00> : vector<32x128xf32>
    %126 = tpu.matmul %124, %125, %cst_45 {dimension_numbers = #tpu.dot_dimension_numbers<[1], [0], [0], [1], [0, 0, 1, 1], [], []>} : vector<32x32xf32>, vector<32x128xf32>, vector<32x128xf32> -> vector<32x128xf32>
    %c0_46 = arith.constant 0 : index
    %c0_47 = arith.constant 0 : index
    %127 = vector.load %arg9[%c0_46, %c0_47] : memref<1x128xf32, #tpu.memory_space<vmem>>, vector<1x128xf32>
    %128 = vector.broadcast %127 : vector<1x128xf32> to vector<32x128xf32>
    %129 = arith.addf %126, %128 : vector<32x128xf32>
    %c0_48 = arith.constant 0 : index
    %c0_49 = arith.constant 0 : index
    %130 = vector.load %arg10[%c0_48, %c0_49] : memref<32x128xf32, #tpu.memory_space<vmem>>, vector<32x128xf32>
    tpu.vector_store %arg10[%c0_48, %c0_49], %129 {strides = array<i32>} : memref<32x128xf32, #tpu.memory_space<vmem>>, vector<32x128xf32>,
    return
  }
  func.func @transform_0(%arg0: i32) -> (i32, i32) {
    %c0_i32 = arith.constant 0 : i32
    %c0_i32_0 = arith.constant 0 : i32
    return %arg0, %c0_i32 : i32, i32
  }
  func.func @transform_1(%arg0: i32) -> (i32, i32) {
    %c0_i32 = arith.constant 0 : i32
    %c0_i32_0 = arith.constant 0 : i32
    %c0_i32_1 = arith.constant 0 : i32
    return %c0_i32, %c0_i32_0 : i32, i32
  }
  func.func @transform_2(%arg0: i32) -> (i32, i32) {
    %c0_i32 = arith.constant 0 : i32
    %c0_i32_0 = arith.constant 0 : i32
    %c0_i32_1 = arith.constant 0 : i32
    return %c0_i32, %c0_i32_0 : i32, i32
  }
  func.func @transform_3(%arg0: i32) -> (i32, i32) {
    %c0_i32 = arith.constant 0 : i32
    %c0_i32_0 = arith.constant 0 : i32
    %c0_i32_1 = arith.constant 0 : i32
    return %c0_i32, %c0_i32_0 : i32, i32
  }
  func.func @transform_4(%arg0: i32) -> (i32, i32) {
    %c0_i32 = arith.constant 0 : i32
    %c0_i32_0 = arith.constant 0 : i32
    %c0_i32_1 = arith.constant 0 : i32
    return %c0_i32, %c0_i32_0 : i32, i32
  }
  func.func @transform_5(%arg0: i32) -> (i32, i32) {
    %c0_i32 = arith.constant 0 : i32
    %c0_i32_0 = arith.constant 0 : i32
    %c0_i32_1 = arith.constant 0 : i32
    return %c0_i32, %c0_i32_0 : i32, i32
  }
  func.func @transform_6(%arg0: i32) -> (i32, i32) {
    %c0_i32 = arith.constant 0 : i32
    %c0_i32_0 = arith.constant 0 : i32
    %c0_i32_1 = arith.constant 0 : i32
    return %c0_i32, %c0_i32_0 : i32, i32
  }
  func.func @transform_7(%arg0: i32) -> (i32, i32) {
    %c0_i32 = arith.constant 0 : i32
    %c0_i32_0 = arith.constant 0 : i32
    %c0_i32_1 = arith.constant 0 : i32
    return %c0_i32, %c0_i32_0 : i32, i32
  }
  func.func @transform_8(%arg0: i32) -> (i32, i32) {
    %c0_i32 = arith.constant 0 : i32
    %c0_i32_0 = arith.constant 0 : i32
    %c0_i32_1 = arith.constant 0 : i32
    return %c0_i32, %c0_i32_0 : i32, i32
  }
  func.func @transform_9(%arg0: i32) -> (i32, i32) {
    %c0_i32 = arith.constant 0 : i32
    %c0_i32_0 = arith.constant 0 : i32
    return %arg0, %c0_i32 : i32, i32
  }
  func.func @transform_10(%arg0: i32) -> (i32, i32) {
    %c0_i32 = arith.constant 0 : i32
    %c0_i32_0 = arith.constant 0 : i32
    %c0_i32_1 = arith.constant 0 : i32
    return %c0_i32, %c0_i32_0 : i32, i32
  }
  func.func @transform_11(%arg0: i32) -> (i32, i32) {
    %c0_i32 = arith.constant 0 : i32
    %c0_i32_0 = arith.constant 0 : i32
    %c0_i32_1 = arith.constant 0 : i32
    return %c0_i32, %c0_i32_0 : i32, i32
  }
}

</mosaic_0001>

<llo_original>
// kernel: tpu_custom_call.1
$region0: #{tpu_custom_call.1}
  #allocation0 [shape = 'u32[]', space=smem, size = 0x4, offset = 0x4, fixed_abs, tag = 'smem constant byte address 0x4 - core index']
  #allocation1 [shape = 'u32[144,128]{1,0:T(1,128)}', space=vmem, size = 0x12000, scoped, tag = 'internal scratch']
  #allocation2 [shape = 'f32[32,512]{1,0:T(8,128)}', space=vmem, size = 0x10000, scoped, tag = 'scratch operand']
  #allocation3 [shape = 'f32[32,128]{1,0:T(8,128)}', space=vmem, size = 0x4000, scoped, tag = 'scratch operand']
  %s0 = inlined_call_operand.vmem [shape: bf16[64,16], index: 0, kind: input, shape index: {}]
  %s1 = inlined_call_operand.hbm [shape: f32[8,128], index: 1, kind: input, shape index: {}]
  %s2 = inlined_call_operand.hbm [shape: f32[8,128], index: 2, kind: input, shape index: {}]
  %s3 = inlined_call_operand.vmem [shape: bf16[16,512], index: 3, kind: input, shape index: {}]
  %s4 = inlined_call_operand.hbm [shape: bf16[128,512], index: 4, kind: input, shape index: {}]
  %s5 = inlined_call_operand.hbm [shape: f32[1,512], index: 5, kind: input, shape index: {}]
  %s6 = inlined_call_operand.hbm [shape: f32[128,128], index: 6, kind: input, shape index: {}]
  %s7 = inlined_call_operand.vmem [shape: f32[32,128], index: 7, kind: input, shape index: {}]
  %s8 = inlined_call_operand.vmem [shape: f32[1,128], index: 8, kind: input, shape index: {}]
  %s9 = inlined_call_operand.hbm [shape: f32[64,128], index: 9, kind: output, shape index: {0}]
  %s10 = inlined_call_operand.hbm [shape: f32[8,128], index: 10, kind: output, shape index: {1}]
  %s11 = inlined_call_operand.hbm [shape: f32[8,128], index: 11, kind: output, shape index: {2}]
  %12 = xla_tuple %s9, %s10, %s11
  %s13 = sld [smem:[#allocation0]]
  $region109: #{tpu_custom_call.1} parent=0
    _
  %s15 = ssub.s32 1, %s13
  %s16 = scalar_select 0, %s15, %s13
  $region1: #{tpu_custom_call.1} parent=0
    #allocation4 [shape = 'u8[4096]{0}', space=vmem, size = 0x1000, scoped, tag = 'input window, operand 1, single buffered']
    #allocation5 [shape = 's32[2]{0}', space=sflag, size = 0x8, scoped, tag = 'scoped memory for tpu_custom_call.1']
    #allocation6 [shape = 's32[2]{0}', space=sflag, size = 0x8, scoped, tag = 'scoped memory for tpu_custom_call.1']
    #allocation7 [shape = 'u8[4096]{0}', space=vmem, size = 0x1000, scoped, tag = 'input window, operand 2, single buffered']
    #allocation8 [shape = 's32[1]{0}', space=sflag, size = 0x4, scoped, tag = 'scoped memory for tpu_custom_call.1']
    #allocation9 [shape = 'u8[131072]{0}', space=vmem, size = 0x20000, scoped, tag = 'input window, operand 4, single buffered']
    #allocation10 [shape = 'u8[2048]{0}', space=vmem, size = 0x800, scoped, tag = 'input window, operand 5, single buffered']
    #allocation11 [shape = 's32[1]{0}', space=sflag, size = 0x4, scoped, tag = 'scoped memory for tpu_custom_call.1']
    #allocation12 [shape = 'u8[65536]{0}', space=vmem, size = 0x10000, scoped, tag = 'input window, operand 6, single buffered']
    #allocation13 [shape = 'u8[32768]{0}', space=vmem, size = 0x8000, scoped, tag = 'output window, operand 0']
    #allocation14 [shape = 'u8[4096]{0}', space=vmem, size = 0x1000, scoped, tag = 'output window, operand 1, single buffered']
    #allocation15 [shape = 's32[1]{0}', space=sflag, size = 0x4, scoped, tag = 'scoped memory for tpu_custom_call.1']
    #allocation16 [shape = 'u8[4096]{0}', space=vmem, size = 0x1000, scoped, tag = 'output window, operand 2, single buffered']
    %17 = vsyncpa [#allocation5], 0
    %18 = vsyncpa [#allocation8], 0
    %19 = vsyncpa [#allocation11], 0
    %20 = vsyncpa [#allocation6], 0
    %s21 = scalar_lea.sflag [#allocation6], 1
    %22 = vsyncpa %s21, 0
    %23 = vsyncpa [#allocation15], 0
    loop: start=0, step=1, limit=4
    $region2: #{tpu_custom_call.1} parent=1 // loop_pre_header
      _
    $region3: #{tpu_custom_call.1} parent=1 // loop_header
      %s25 = sphi 0, %s29
      %p26 = scmp.ge.s32.totalorder %s25, 4
      %s35 = sphi 0, %s37
      %s38 = sphi 0, %s35
      %s39 = sphi 0, %s38
      %s55 = sphi 0, %s39
      %s59 = sphi 0, %s59
      %s61 = sphi 0, %s59
      %s62 = sphi 0, %s61
      %s76 = sphi 0, %s62
      %s80 = sphi 0, %s80
      %s82 = sphi 0, %s80
      %s83 = sphi 0, %s82
      %s97 = sphi 0, %s83
      %s101 = sphi 0, %s101
      %s103 = sphi 0, %s101
      %s104 = sphi 0, %s103
      %s118 = sphi 0, %s104
      %s122 = sphi 0, %s122
      %s124 = sphi 0, %s122
      %s125 = sphi 0, %s124
      %s139 = sphi 0, %s125
      %s143 = sphi 0, %s143
      %s145 = sphi 0, %s143
      %s146 = sphi 0, %s145
      %s160 = sphi 0, %s146
      %s164 = sphi 0, %s164
      %s166 = sphi 0, %s164
      %s167 = sphi 0, %s166
      %s181 = sphi 0, %s167
      %s185 = sphi 0, %s185
      %s187 = sphi 0, %s185
      %s188 = sphi 0, %s187
      %s202 = sphi 0, %s188
      %s206 = sphi 0, %s206
      %s208 = sphi 0, %s206
      %s209 = sphi 0, %s208
      %s223 = sphi 0, %s209
      %s229 = sphi 0, %s231
      %s232 = sphi 0, %s229
      %s233 = sphi 0, %s232
      %s249 = sphi 0, %s233
      %s253 = sphi 0, %s253
      %s255 = sphi 0, %s253
      %s256 = sphi 0, %s255
      %s270 = sphi 0, %s256
      %s274 = sphi 0, %s274
      %s276 = sphi 0, %s274
      %s277 = sphi 0, %s276
      %s291 = sphi 0, %s277
    $region4: #{tpu_custom_call.1} parent=1 // loop_header_branch
      %28 = sbr.rel (%p26) target = $region8
    $region5: #{tpu_custom_call.1} parent=1 // loop_body
      %s30 = ssub.s32 %s25, 1
      %s31 = ssub.s32 %s25, 2
      %s32 = sadd.s32 %s25, 1
      %s33 = ssub.s32 %s25, %s32
      %p34 = scmp.eq.s32.totalorder %s33, 0
      %s36 = sadd.s32 %s35, 1
      %s37 = scalar_select %p34, %s35, %s36
      %p40 = pneg %p34
      %p41 = scmp.eq.s32.totalorder %s25, 1
      %p42 = por %p40, %p41
      %p43 = scmp.ne.s32.totalorder %s35, %s38
      %p44 = scmp.eq.s32.totalorder %s25, 0
      %p45 = por %p43, %p44
      %p46 = scmp.ne.s32.totalorder %s35, %s38
      %p47 = scmp.eq.s32.totalorder %s30, 1
      %p48 = por %p46, %p47
      %p49 = scmp.ne.s32.totalorder %s38, %s39
      %p50 = scmp.eq.s32.totalorder %s30, 0
      %p51 = por %p49, %p50
      %p52 = scmp.ne.s32.totalorder %s38, %s39
      %p53 = scmp.eq.s32.totalorder %s31, 1
      %p54 = por %p52, %p53
      %p56 = scmp.ne.s32.totalorder %s39, %s55
      %p57 = scmp.eq.s32.totalorder %s31, 0
      %p58 = por %p56, %p57
      %s60 = sadd.s32 %s59, 1
      %p63 = scmp.eq.s32.totalorder %s25, 1
      %p64 = scmp.ne.s32.totalorder %s59, %s61
      %p65 = scmp.eq.s32.totalorder %s25, 0
      %p66 = por %p64, %p65
      %p67 = scmp.ne.s32.totalorder %s59, %s61
      %p68 = scmp.eq.s32.totalorder %s30, 1
      %p69 = por %p67, %p68
      %p70 = scmp.ne.s32.totalorder %s61, %s62
      %p71 = scmp.eq.s32.totalorder %s30, 0
      %p72 = por %p70, %p71
      %p73 = scmp.ne.s32.totalorder %s61, %s62
      %p74 = scmp.eq.s32.totalorder %s31, 1
      %p75 = por %p73, %p74
      %p77 = scmp.ne.s32.totalorder %s62, %s76
      %p78 = scmp.eq.s32.totalorder %s31, 0
      %p79 = por %p77, %p78
      %s81 = sadd.s32 %s80, 1
      %p84 = scmp.eq.s32.totalorder %s25, 1
      %p85 = scmp.ne.s32.totalorder %s80, %s82
      %p86 = scmp.eq.s32.totalorder %s25, 0
      %p87 = por %p85, %p86
      %p88 = scmp.ne.s32.totalorder %s80, %s82
      %p89 = scmp.eq.s32.totalorder %s30, 1
      %p90 = por %p88, %p89
      %p91 = scmp.ne.s32.totalorder %s82, %s83
      %p92 = scmp.eq.s32.totalorder %s30, 0
      %p93 = por %p91, %p92
      %p94 = scmp.ne.s32.totalorder %s82, %s83
      %p95 = scmp.eq.s32.totalorder %s31, 1
      %p96 = por %p94, %p95
      %p98 = scmp.ne.s32.totalorder %s83, %s97
      %p99 = scmp.eq.s32.totalorder %s31, 0
      %p100 = por %p98, %p99
      %s102 = sadd.s32 %s101, 1
      %p105 = scmp.eq.s32.totalorder %s25, 1
      %p106 = scmp.ne.s32.totalorder %s101, %s103
      %p107 = scmp.eq.s32.totalorder %s25, 0
      %p108 = por %p106, %p107
      %p109 = scmp.ne.s32.totalorder %s101, %s103
      %p110 = scmp.eq.s32.totalorder %s30, 1
      %p111 = por %p109, %p110
      %p112 = scmp.ne.s32.totalorder %s103, %s104
      %p113 = scmp.eq.s32.totalorder %s30, 0
      %p114 = por %p112, %p113
      %p115 = scmp.ne.s32.totalorder %s103, %s104
      %p116 = scmp.eq.s32.totalorder %s31, 1
      %p117 = por %p115, %p116
      %p119 = scmp.ne.s32.totalorder %s104, %s118
      %p120 = scmp.eq.s32.totalorder %s31, 0
      %p121 = por %p119, %p120
      %s123 = sadd.s32 %s122, 1
      %p126 = scmp.eq.s32.totalorder %s25, 1
      %p127 = scmp.ne.s32.totalorder %s122, %s124
      %p128 = scmp.eq.s32.totalorder %s25, 0
      %p129 = por %p127, %p128
      %p130 = scmp.ne.s32.totalorder %s122, %s124
      %p131 = scmp.eq.s32.totalorder %s30, 1
      %p132 = por %p130, %p131
      %p133 = scmp.ne.s32.totalorder %s124, %s125
      %p134 = scmp.eq.s32.totalorder %s30, 0
      %p135 = por %p133, %p134
      %p136 = scmp.ne.s32.totalorder %s124, %s125
      %p137 = scmp.eq.s32.totalorder %s31, 1
      %p138 = por %p136, %p137
      %p140 = scmp.ne.s32.totalorder %s125, %s139
      %p141 = scmp.eq.s32.totalorder %s31, 0
      %p142 = por %p140, %p141
      %s144 = sadd.s32 %s143, 1
      %p147 = scmp.eq.s32.totalorder %s25, 1
      %p148 = scmp.ne.s32.totalorder %s143, %s145
      %p149 = scmp.eq.s32.totalorder %s25, 0
      %p150 = por %p148, %p149
      %p151 = scmp.ne.s32.totalorder %s143, %s145
      %p152 = scmp.eq.s32.totalorder %s30, 1
      %p153 = por %p151, %p152
      %p154 = scmp.ne.s32.totalorder %s145, %s146
      %p155 = scmp.eq.s32.totalorder %s30, 0
      %p156 = por %p154, %p155
      %p157 = scmp.ne.s32.totalorder %s145, %s146
      %p158 = scmp.eq.s32.totalorder %s31, 1
      %p159 = por %p157, %p158
      %p161 = scmp.ne.s32.totalorder %s146, %s160
      %p162 = scmp.eq.s32.totalorder %s31, 0
      %p163 = por %p161, %p162
      %s165 = sadd.s32 %s164, 1
      %p168 = scmp.eq.s32.totalorder %s25, 1
      %p169 = scmp.ne.s32.totalorder %s164, %s166
      %p170 = scmp.eq.s32.totalorder %s25, 0
      %p171 = por %p169, %p170
      %p172 = scmp.ne.s32.totalorder %s164, %s166
      %p173 = scmp.eq.s32.totalorder %s30, 1
      %p174 = por %p172, %p173
      %p175 = scmp.ne.s32.totalorder %s166, %s167
      %p176 = scmp.eq.s32.totalorder %s30, 0
      %p177 = por %p175, %p176
      %p178 = scmp.ne.s32.totalorder %s166, %s167
      %p179 = scmp.eq.s32.totalorder %s31, 1
      %p180 = por %p178, %p179
      %p182 = scmp.ne.s32.totalorder %s167, %s181
      %p183 = scmp.eq.s32.totalorder %s31, 0
      %p184 = por %p182, %p183
      %s186 = sadd.s32 %s185, 1
      %p189 = scmp.eq.s32.totalorder %s25, 1
      %p190 = scmp.ne.s32.totalorder %s185, %s187
      %p191 = scmp.eq.s32.totalorder %s25, 0
      %p192 = por %p190, %p191
      %p193 = scmp.ne.s32.totalorder %s185, %s187
      %p194 = scmp.eq.s32.totalorder %s30, 1
      %p195 = por %p193, %p194
      %p196 = scmp.ne.s32.totalorder %s187, %s188
      %p197 = scmp.eq.s32.totalorder %s30, 0
      %p198 = por %p196, %p197
      %p199 = scmp.ne.s32.totalorder %s187, %s188
      %p200 = scmp.eq.s32.totalorder %s31, 1
      %p201 = por %p199, %p200
      %p203 = scmp.ne.s32.totalorder %s188, %s202
      %p204 = scmp.eq.s32.totalorder %s31, 0
      %p205 = por %p203, %p204
      %s207 = sadd.s32 %s206, 1
      %p210 = scmp.eq.s32.totalorder %s25, 1
      %p211 = scmp.ne.s32.totalorder %s206, %s208
      %p212 = scmp.eq.s32.totalorder %s25, 0
      %p213 = por %p211, %p212
      %p214 = scmp.ne.s32.totalorder %s206, %s208
      %p215 = scmp.eq.s32.totalorder %s30, 1
      %p216 = por %p214, %p215
      %p217 = scmp.ne.s32.totalorder %s208, %s209
      %p218 = scmp.eq.s32.totalorder %s30, 0
      %p219 = por %p217, %p218
      %p220 = scmp.ne.s32.totalorder %s208, %s209
      %p221 = scmp.eq.s32.totalorder %s31, 1
      %p222 = por %p220, %p221
      %p224 = scmp.ne.s32.totalorder %s209, %s223
      %p225 = scmp.eq.s32.totalorder %s31, 0
      %p226 = por %p224, %p225
      %s227 = ssub.s32 %s25, %s32
      %p228 = scmp.eq.s32.totalorder %s227, 0
      %s230 = sadd.s32 %s229, 1
      %s231 = scalar_select %p228, %s229, %s230
      %p234 = pneg %p228
      %p235 = scmp.eq.s32.totalorder %s25, 1
      %p236 = por %p234, %p235
      %p237 = scmp.ne.s32.totalorder %s229, %s232
      %p238 = scmp.eq.s32.totalorder %s25, 0
      %p239 = por %p237, %p238
      %p240 = scmp.ne.s32.totalorder %s229, %s232
      %p241 = scmp.eq.s32.totalorder %s30, 1
      %p242 = por %p240, %p241
      %p243 = scmp.ne.s32.totalorder %s232, %s233
      %p244 = scmp.eq.s32.totalorder %s30, 0
      %p245 = por %p243, %p244
      %p246 = scmp.ne.s32.totalorder %s232, %s233
      %p247 = scmp.eq.s32.totalorder %s31, 1
      %p248 = por %p246, %p247
      %p250 = scmp.ne.s32.totalorder %s233, %s249
      %p251 = scmp.eq.s32.totalorder %s31, 0
      %p252 = por %p250, %p251
      %s254 = sadd.s32 %s253, 1
      %p257 = scmp.eq.s32.totalorder %s25, 1
      %p258 = scmp.ne.s32.totalorder %s253, %s255
      %p259 = scmp.eq.s32.totalorder %s25, 0
      %p260 = por %p258, %p259
      %p261 = scmp.ne.s32.totalorder %s253, %s255
      %p262 = scmp.eq.s32.totalorder %s30, 1
      %p263 = por %p261, %p262
      %p264 = scmp.ne.s32.totalorder %s255, %s256
      %p265 = scmp.eq.s32.totalorder %s30, 0
      %p266 = por %p264, %p265
      %p267 = scmp.ne.s32.totalorder %s255, %s256
      %p268 = scmp.eq.s32.totalorder %s31, 1
      %p269 = por %p267, %p268
      %p271 = scmp.ne.s32.totalorder %s256, %s270
      %p272 = scmp.eq.s32.totalorder %s31, 0
      %p273 = por %p271, %p272
      %s275 = sadd.s32 %s274, 1
      %p278 = scmp.eq.s32.totalorder %s25, 1
      %p279 = scmp.ne.s32.totalorder %s274, %s276
      %p280 = scmp.eq.s32.totalorder %s25, 0
      %p281 = por %p279, %p280
      %p282 = scmp.ne.s32.totalorder %s274, %s276
      %p283 = scmp.eq.s32.totalorder %s30, 1
      %p284 = por %p282, %p283
      %p285 = scmp.ne.s32.totalorder %s276, %s277
      %p286 = scmp.eq.s32.totalorder %s30, 0
      %p287 = por %p285, %p286
      %p288 = scmp.ne.s32.totalorder %s276, %s277
      %p289 = scmp.eq.s32.totalorder %s31, 1
      %p290 = por %p288, %p289
      %p292 = scmp.ne.s32.totalorder %s277, %s291
      %p293 = scmp.eq.s32.totalorder %s31, 0
      %p294 = por %p292, %p293
      %p295 = scmp.le.s32.totalorder 1, %s25
      %p296 = scmp.lt.s32.totalorder %s25, 3
      %p297 = pnand %p295, %p296
      %p298 = pneg %p297
      // Predicated region
      $region9: #{tpu_custom_call.1} parent=5 // pred_check
        _
      $region10: #{tpu_custom_call.1} parent=5 // pred_check_branch
        %300 = sbr.rel (%p297) target = $region12
      $region11: #{tpu_custom_call.1} parent=5 // pred_region
        %s301 = ssub.s32 %s25, 1
        // Predicated region
        $region13: #{tpu_custom_call.1} parent=11 // pred_check
          %p302 = pneg %p72
        $region14: #{tpu_custom_call.1} parent=11 // pred_check_branch
          %304 = sbr.rel (%p302) target = $region16
        $region15: #{tpu_custom_call.1} parent=11 // pred_region
          %s306 = ssub.s32 128, 128
          %307 = vsyncadd [#allocation5], %s306
          %s309 = sshll.u32 [#allocation4], 4
          %s310 = int_to_ptr.vmem [resolvable:$true] %s309
          %312 = dma.hbm_to_vmem [thread:$0]  %s1, 128, %s310, [#allocation5]
        $region16: #{tpu_custom_call.1} parent=11 // pred_fallthru
          _
        // Predicated region
        $region17: #{tpu_custom_call.1} parent=11 // pred_check
          %p313 = pneg %p93
        $region18: #{tpu_custom_call.1} parent=11 // pred_check_branch
          %315 = sbr.rel (%p313) target = $region20
        $region19: #{tpu_custom_call.1} parent=11 // pred_region
          %s317 = ssub.s32 128, 128
          %318 = vsyncadd [#allocation8], %s317
          %s320 = sshll.u32 [#allocation7], 4
          %s321 = int_to_ptr.vmem [resolvable:$true] %s320
          %323 = dma.hbm_to_vmem [thread:$0]  %s2, 128, %s321, [#allocation8]
        $region20: #{tpu_custom_call.1} parent=11 // pred_fallthru
          _
        // Predicated region
        $region21: #{tpu_custom_call.1} parent=11 // pred_check
          %p324 = pneg %p114
        $region22: #{tpu_custom_call.1} parent=11 // pred_check_branch
          %326 = sbr.rel (%p324) target = $region24
        $region23: #{tpu_custom_call.1} parent=11 // pred_region
          _
        $region24: #{tpu_custom_call.1} parent=11 // pred_fallthru
          _
        // Predicated region
        $region25: #{tpu_custom_call.1} parent=11 // pred_check
          %p327 = pneg %p135
        $region26: #{tpu_custom_call.1} parent=11 // pred_check_branch
          %329 = sbr.rel (%p327) target = $region28
        $region27: #{tpu_custom_call.1} parent=11 // pred_region
          %s331 = ssub.s32 4096, 4096
          %332 = vsyncadd [#allocation8], %s331
          %s333 = sshll.u32 [#allocation9], 4
          %s334 = int_to_ptr.vmem [resolvable:$true] %s333
          %339 = dma.hbm_to_vmem [thread:$0]  %s4, 4096, %s334, [#allocation8], 256, 256, 16
        $region28: #{tpu_custom_call.1} parent=11 // pred_fallthru
          _
        // Predicated region
        $region29: #{tpu_custom_call.1} parent=11 // pred_check
          %p340 = pneg %p156
        $region30: #{tpu_custom_call.1} parent=11 // pred_check_branch
          %342 = sbr.rel (%p340) target = $region32
        $region31: #{tpu_custom_call.1} parent=11 // pred_region
          %s344 = ssub.s32 64, 64
          %345 = vsyncadd [#allocation11], %s344
          %s347 = sshll.u32 [#allocation10], 4
          %s348 = int_to_ptr.vmem [resolvable:$true] %s347
          %350 = dma.hbm_to_vmem [thread:$0]  %s5, 64, %s348, [#allocation11]
        $region32: #{tpu_custom_call.1} parent=11 // pred_fallthru
          _
        // Predicated region
        $region33: #{tpu_custom_call.1} parent=11 // pred_check
          %p351 = pneg %p177
        $region34: #{tpu_custom_call.1} parent=11 // pred_check_branch
          %353 = sbr.rel (%p351) target = $region36
        $region35: #{tpu_custom_call.1} parent=11 // pred_region
          %s355 = ssub.s32 2048, 2048
          %356 = vsyncadd [#allocation11], %s355
          %s357 = sshll.u32 [#allocation12], 4
          %s358 = int_to_ptr.vmem [resolvable:$true] %s357
          %363 = dma.hbm_to_vmem [thread:$0]  %s6, 2048, %s358, [#allocation11], 128, 128, 8
        $region36: #{tpu_custom_call.1} parent=11 // pred_fallthru
          _
        // Predicated region
        $region37: #{tpu_custom_call.1} parent=11 // pred_check
          %p364 = pneg %p198
        $region38: #{tpu_custom_call.1} parent=11 // pred_check_branch
          %366 = sbr.rel (%p364) target = $region40
        $region39: #{tpu_custom_call.1} parent=11 // pred_region
          _
        $region40: #{tpu_custom_call.1} parent=11 // pred_fallthru
          _
        // Predicated region
        $region41: #{tpu_custom_call.1} parent=11 // pred_check
          %p367 = pneg %p219
        $region42: #{tpu_custom_call.1} parent=11 // pred_check_branch
          %369 = sbr.rel (%p367) target = $region44
        $region43: #{tpu_custom_call.1} parent=11 // pred_region
          _
        $region44: #{tpu_custom_call.1} parent=11 // pred_fallthru
          _
      $region12: #{tpu_custom_call.1} parent=5 // pred_fallthru
        _
      %p370 = scmp.lt.s32.totalorder %s25, 2
      // Predicated region
      $region45: #{tpu_custom_call.1} parent=5 // pred_check
        %p371 = pneg %p370
      $region46: #{tpu_custom_call.1} parent=5 // pred_check_branch
        %373 = sbr.rel (%p371) target = $region48
      $region47: #{tpu_custom_call.1} parent=5 // pred_region
        // Predicated region
        $region49: #{tpu_custom_call.1} parent=47 // pred_check
          %p374 = pneg %p45
        $region50: #{tpu_custom_call.1} parent=47 // pred_check_branch
          %376 = sbr.rel (%p374) target = $region52
        $region51: #{tpu_custom_call.1} parent=47 // pred_region
          %s377 = smul.u32 4, %s25
          %p378 = scmp.lt.s32.totalorder %s377, 7
          %s379 = scalar_select %p378, %s377, 7
          %s380 = smul.addr %s379, 4
          %s381 = scalar_lea.vmem %s0, %s380
          %s382 = smul.u32 4, %s25
        $region52: #{tpu_custom_call.1} parent=47 // pred_fallthru
          _
      $region48: #{tpu_custom_call.1} parent=5 // pred_fallthru
        _
      %p383 = scmp.le.s32.totalorder 1, %s25
      %p384 = scmp.lt.s32.totalorder %s25, 3
      %p385 = pnand %p383, %p384
      %p386 = pneg %p385
      // Predicated region
      $region53: #{tpu_custom_call.1} parent=5 // pred_check
        _
      $region54: #{tpu_custom_call.1} parent=5 // pred_check_branch
        %388 = sbr.rel (%p385) target = $region56
      $region55: #{tpu_custom_call.1} parent=5 // pred_region
        %s389 = ssub.s32 %s25, 1
        // Predicated region
        $region57: #{tpu_custom_call.1} parent=55 // pred_check
          %p390 = pneg %p72
        $region58: #{tpu_custom_call.1} parent=55 // pred_check_branch
          %392 = sbr.rel (%p390) target = $region60
        $region59: #{tpu_custom_call.1} parent=55 // pred_region
          %393 = dma.done [#allocation5], 128
        $region60: #{tpu_custom_call.1} parent=55 // pred_fallthru
          _
        // Predicated region
        $region61: #{tpu_custom_call.1} parent=55 // pred_check
          %p394 = pneg %p93
        $region62: #{tpu_custom_call.1} parent=55 // pred_check_branch
          %396 = sbr.rel (%p394) target = $region64
        $region63: #{tpu_custom_call.1} parent=55 // pred_region
          %397 = dma.done [#allocation8], 128
        $region64: #{tpu_custom_call.1} parent=55 // pred_fallthru
          _
        // Predicated region
        $region65: #{tpu_custom_call.1} parent=55 // pred_check
          %p398 = pneg %p135
        $region66: #{tpu_custom_call.1} parent=55 // pred_check_branch
          %400 = sbr.rel (%p398) target = $region68
        $region67: #{tpu_custom_call.1} parent=55 // pred_region
          %401 = dma.done [#allocation8], 4096
        $region68: #{tpu_custom_call.1} parent=55 // pred_fallthru
          _
        // Predicated region
        $region69: #{tpu_custom_call.1} parent=55 // pred_check
          %p402 = pneg %p156
        $region70: #{tpu_custom_call.1} parent=55 // pred_check_branch
          %404 = sbr.rel (%p402) target = $region72
        $region71: #{tpu_custom_call.1} parent=55 // pred_region
          %405 = dma.done [#allocation11], 64
        $region72: #{tpu_custom_call.1} parent=55 // pred_fallthru
          _
        // Predicated region
        $region73: #{tpu_custom_call.1} parent=55 // pred_check
          %p406 = pneg %p177
        $region74: #{tpu_custom_call.1} parent=55 // pred_check_branch
          %408 = sbr.rel (%p406) target = $region76
        $region75: #{tpu_custom_call.1} parent=55 // pred_region
          %409 = dma.done [#allocation11], 2048
        $region76: #{tpu_custom_call.1} parent=55 // pred_fallthru
          _
        %s410 = smul.u32 4, %s30
        %p411 = scmp.lt.s32.totalorder %s410, 7
        %s412 = scalar_select %p411, %s410, 7
        %s413 = smul.addr %s412, 4
        %s414 = scalar_lea.vmem %s0, %s413
        %p415 = pneg %p51
        %p416 = pneg %p48
        %p417 = pneg %p72
        %p418 = pneg %p69
        %p419 = pneg %p93
        %p420 = pneg %p90
        %p421 = pneg %p114
        %p422 = pneg %p111
        %p423 = pneg %p135
        %p424 = pneg %p132
        %p425 = pneg %p156
        %p426 = pneg %p153
        %p427 = pneg %p177
        %p428 = pneg %p174
        %p429 = pneg %p198
        %p430 = pneg %p195
        %p431 = pneg %p219
        %p432 = pneg %p216
        %p433 = pneg %p245
        %p434 = pneg %p242
        %s435 = sand.u32 %s232, 1
        %s436 = scalar_lea.sflag [#allocation6], %s435
        %s437 = sand.u32 %s232, 1
        %s438 = smul.addr %s437, 32
        %s439 = scalar_lea.vmem [#allocation13], %s438
        %p440 = pneg %p266
        %p441 = pneg %p263
        %p442 = pneg %p287
        %p443 = pneg %p284
        %s444 = smul.u32 4, %s30
        %p445 = scmp.lt.s32.totalorder %s444, 7
        %s446 = scalar_select %p445, %s444, 7
        %s447 = smul.addr %s446, 4
        %s448 = scalar_lea.vmem %s0, %s447
        %s449 = smul.u32 4, %s30
        %s450 = smul.u32 4, %s30
        %p452 = scmp.eq.s32.totalorder %s30, 0
        // Predicated region
        $region77: #{tpu_custom_call.1} parent=55 // pred_check
          %p453 = pneg %p452
        $region78: #{tpu_custom_call.1} parent=55 // pred_check_branch
          %455 = sbr.rel (%p453) target = $region80
        $region79: #{tpu_custom_call.1} parent=55 // pred_region
          %v456 = vld [vmem:[#allocation4] sm:$0xff]
          %457 = vst [vmem:[#allocation14] sm:$0xff] %v456
          %v458 = vld [vmem:[#allocation7] sm:$0xff]
          %459 = vst [vmem:[#allocation16] sm:$0xff] %v458
        $region80: #{tpu_custom_call.1} parent=55 // pred_fallthru
          _
        %v460 = vld [vmem:[%s448] sm:$0xf]
        %v461 = vld [vmem:[%s448 + $0x4] sm:$0xf]
        %v462 = vld [vmem:[%s448 + $0x8] sm:$0xf]
        %v463 = vld [vmem:[%s448 + $0xc] sm:$0xf]
        %v464 = vld [vmem:[%s3] sm:$0xff]
        %v465 = vld [vmem:[%s3 + $0x8] sm:$0xff]
        %v466 = vld [vmem:[%s3 + $0x10] sm:$0xff]
        %v467 = vld [vmem:[%s3 + $0x18] sm:$0xff]
        %v468 = vld [vmem:[#allocation10] sm:$0xf]
        %v470 = vlaneseq
        %v471 = vshrl.u32 %v470, 7
        %v472 = vsub.s32 0, %v471
        %v473 = vrot.slane %v468, %v472
        %v474 = vlaneseq
        %v475 = vshrl.u32 %v474, 7
        %v476 = vsub.s32 1, %v475
        %v477 = vrot.slane %v468, %v476
        %v478 = vlaneseq
        %v479 = vshrl.u32 %v478, 7
        %v480 = vsub.s32 2, %v479
        %v481 = vrot.slane %v468, %v480
        %v482 = vlaneseq
        %v483 = vshrl.u32 %v482, 7
        %v484 = vsub.s32 3, %v483
        %v485 = vrot.slane %v468, %v484
        %v494 = vunpack.c.l.b16 %v460
        %v495 = vunpack.c.l.b16 %v461
        %v496 = vunpack.c.l.b16 %v462
        %v497 = vunpack.c.l.b16 %v463
        %v498 = vpack.c.b16 %v495, %v494
        %v499 = vpack.c.b16 %v497, %v496
        %v504 = vunpack.c.l.b16 %v464
        %v505 = vunpack.c.h.b16 %v464
        %v506 = vunpack.c.l.b16 %v465
        %v507 = vunpack.c.h.b16 %v465
        %v508 = vunpack.c.l.b16 %v466
        %v509 = vunpack.c.h.b16 %v466
        %v510 = vunpack.c.l.b16 %v467
        %v511 = vunpack.c.h.b16 %v467
        %v512 = vpack.c.b16 %v508, %v504
        %v513 = vpack.c.b16 %v509, %v505
        %v514 = vpack.c.b16 %v510, %v506
        %v515 = vpack.c.b16 %v511, %v507
        %vm520 = vcmask 130048
        %v522 = vsel %vm520, %v498, 0
        %v525 = vsel %vm520, %v499, 0
        %527 = vmatprep.subr.bf16.mxu0 %v513
        %528 = vmatpush1.bf16.msra.mxu0 %v512
        %529 = vmatprep.subr.bf16.mxu0 0
        %530 = vmatpush1.bf16.msra.mxu0 0
        %531 = vmatprep.subr.bf16.mxu0 0
        %532 = vmatpush1.bf16.msra.mxu0 0
        %533 = vmatprep.subr.bf16.mxu0 0
        %534 = vmatpush1.bf16.msra.mxu0 0
        %535 = vmatprep.subr.bf16.mxu0 0
        %536 = vmatpush1.bf16.msra.mxu0 0
        %537 = vmatprep.subr.bf16.mxu0 0
        %538 = vmatpush1.bf16.msra.mxu0 0
        %539 = vmatprep.subr.bf16.mxu0 0
        %540 = vmatpush1.bf16.msra.mxu0 0
        %541 = vmatprep.subr.bf16.mxu0 0
        %542 = vmatpush1.bf16.msra.mxu0 0
        %543 = vmatprep.subr.bf16.mxu0 0
        %544 = vmatpush1.bf16.msra.mxu0 0
        %545 = vmatprep.subr.bf16.mxu0 0
        %546 = vmatpush1.bf16.msra.mxu0 0
        %547 = vmatprep.subr.bf16.mxu0 0
        %548 = vmatpush1.bf16.msra.mxu0 0
        %549 = vmatprep.subr.bf16.mxu0 0
        %550 = vmatpush1.bf16.msra.mxu0 0
        %551 = vmatprep.subr.bf16.mxu0 0
        %552 = vmatpush1.bf16.msra.mxu0 0
        %553 = vmatprep.subr.bf16.mxu0 0
        %554 = vmatpush1.bf16.msra.mxu0 0
        %555 = vmatprep.subr.bf16.mxu0 0
        %556 = vmatpush1.bf16.msra.mxu0 0
        %557 = vmatprep.subr.bf16.mxu0 0
        %558 = vmatpush1.bf16.msra.mxu0 0
        %559 = vmatprep.mubr.bf16.mxu0 0
        %560 = vmatmul.mubr.bf16.gmra.mrb[0].mxu0 %v522
        %v561 = vpop.f32.mrb[0].mxu0
        %v562 = vadd.f32 %v473, %v561
        %v563 = vpop.f32.mrb[0].mxu0
        %v564 = vadd.f32 %v477, %v563
        %v565 = vpop.f32.mrb[0].mxu0
        %v566 = vadd.f32 %v473, %v565
        %v567 = vpop.f32.mrb[0].mxu0
        %v568 = vadd.f32 %v477, %v567
        %569 = vmatprep.mubr.bf16.mxu0 0
        %570 = vmatmul.mubr.bf16.gmra.mrb[0].mxu0 %v525
        %v571 = vpop.f32.mrb[0].mxu0
        %v572 = vadd.f32 %v473, %v571
        %v573 = vpop.f32.mrb[0].mxu0
        %v574 = vadd.f32 %v477, %v573
        %v575 = vpop.f32.mrb[0].mxu0
        %v576 = vadd.f32 %v473, %v575
        %v577 = vpop.f32.mrb[0].mxu0
        %v578 = vadd.f32 %v477, %v577
        %579 = vdwg.mxu0
        %580 = vmatprep.subr.bf16.mxu0 %v515
        %581 = vmatpush1.bf16.msra.mxu0 %v514
        %582 = vmatprep.subr.bf16.mxu0 0
        %583 = vmatpush1.bf16.msra.mxu0 0
        %584 = vmatprep.subr.bf16.mxu0 0
        %585 = vmatpush1.bf16.msra.mxu0 0
        %586 = vmatprep.subr.bf16.mxu0 0
        %587 = vmatpush1.bf16.msra.mxu0 0
        %588 = vmatprep.subr.bf16.mxu0 0
        %589 = vmatpush1.bf16.msra.mxu0 0
        %590 = vmatprep.subr.bf16.mxu0 0
        %591 = vmatpush1.bf16.msra.mxu0 0
        %592 = vmatprep.subr.bf16.mxu0 0
        %593 = vmatpush1.bf16.msra.mxu0 0
        %594 = vmatprep.subr.bf16.mxu0 0
        %595 = vmatpush1.bf16.msra.mxu0 0
        %596 = vmatprep.subr.bf16.mxu0 0
        %597 = vmatpush1.bf16.msra.mxu0 0
        %598 = vmatprep.subr.bf16.mxu0 0
        %599 = vmatpush1.bf16.msra.mxu0 0
        %600 = vmatprep.subr.bf16.mxu0 0
        %601 = vmatpush1.bf16.msra.mxu0 0
        %602 = vmatprep.subr.bf16.mxu0 0
        %603 = vmatpush1.bf16.msra.mxu0 0
        %604 = vmatprep.subr.bf16.mxu0 0
        %605 = vmatpush1.bf16.msra.mxu0 0
        %606 = vmatprep.subr.bf16.mxu0 0
        %607 = vmatpush1.bf16.msra.mxu0 0
        %608 = vmatprep.subr.bf16.mxu0 0
        %609 = vmatpush1.bf16.msra.mxu0 0
        %610 = vmatprep.subr.bf16.mxu0 0
        %611 = vmatpush1.bf16.msra.mxu0 0
        %612 = vmatprep.mubr.bf16.mxu0 0
        %613 = vmatmul.mubr.bf16.gmra.mrb[0].mxu0 %v522
        %v614 = vpop.f32.mrb[0].mxu0
        %v615 = vadd.f32 %v481, %v614
        %v616 = vpop.f32.mrb[0].mxu0
        %v617 = vadd.f32 %v485, %v616
        %v618 = vpop.f32.mrb[0].mxu0
        %v619 = vadd.f32 %v481, %v618
        %v620 = vpop.f32.mrb[0].mxu0
        %v621 = vadd.f32 %v485, %v620
        %622 = vmatprep.mubr.bf16.mxu0 0
        %623 = vmatmul.mubr.bf16.gmra.mrb[0].mxu0 %v525
        %v624 = vpop.f32.mrb[0].mxu0
        %v625 = vadd.f32 %v481, %v624
        %v626 = vpop.f32.mrb[0].mxu0
        %v627 = vadd.f32 %v485, %v626
        %v628 = vpop.f32.mrb[0].mxu0
        %v629 = vadd.f32 %v481, %v628
        %v630 = vpop.f32.mrb[0].mxu0
        %v631 = vadd.f32 %v485, %v630
        %632 = vdwg.mxu0
        %633 = vst [vmem:[#allocation2] sm:$0xff] %v562
        %634 = vst [vmem:[#allocation2 + $0x8] sm:$0xff] %v564
        %635 = vst [vmem:[#allocation2 + $0x10] sm:$0xff] %v615
        %636 = vst [vmem:[#allocation2 + $0x18] sm:$0xff] %v617
        %637 = vst [vmem:[#allocation2 + $0x20] sm:$0xff] %v566
        %638 = vst [vmem:[#allocation2 + $0x28] sm:$0xff] %v568
        %639 = vst [vmem:[#allocation2 + $0x30] sm:$0xff] %v619
        %640 = vst [vmem:[#allocation2 + $0x38] sm:$0xff] %v621
        %641 = vst [vmem:[#allocation2 + $0x40] sm:$0xff] %v572
        %642 = vst [vmem:[#allocation2 + $0x48] sm:$0xff] %v574
        %643 = vst [vmem:[#allocation2 + $0x50] sm:$0xff] %v625
        %644 = vst [vmem:[#allocation2 + $0x58] sm:$0xff] %v627
        %645 = vst [vmem:[#allocation2 + $0x60] sm:$0xff] %v576
        %646 = vst [vmem:[#allocation2 + $0x68] sm:$0xff] %v578
        %647 = vst [vmem:[#allocation2 + $0x70] sm:$0xff] %v629
        %648 = vst [vmem:[#allocation2 + $0x78] sm:$0xff] %v631
        %v649 = vld [vmem:[#allocation9] sm:$0xff]
        %v650 = vld [vmem:[#allocation9 + $0x8] sm:$0xff]
        %v651 = vld [vmem:[#allocation9 + $0x10] sm:$0xff]
        %v652 = vld [vmem:[#allocation9 + $0x18] sm:$0xff]
        %v653 = vld [vmem:[#allocation9 + $0x20] sm:$0xff]
        %v654 = vld [vmem:[#allocation9 + $0x28] sm:$0xff]
        %v655 = vld [vmem:[#allocation9 + $0x30] sm:$0xff]
        %v656 = vld [vmem:[#allocation9 + $0x38] sm:$0xff]
        %v657 = vld [vmem:[#allocation9 + $0x40] sm:$0xff]
        %v658 = vld [vmem:[#allocation9 + $0x48] sm:$0xff]
        %v659 = vld [vmem:[#allocation9 + $0x50] sm:$0xff]
        %v660 = vld [vmem:[#allocation9 + $0x58] sm:$0xff]
        %v661 = vld [vmem:[#allocation9 + $0x60] sm:$0xff]
        %v662 = vld [vmem:[#allocation9 + $0x68] sm:$0xff]
        %v663 = vld [vmem:[#allocation9 + $0x70] sm:$0xff]
        %v664 = vld [vmem:[#allocation9 + $0x78] sm:$0xff]
        %v665 = vld [vmem:[#allocation9 + $0x80] sm:$0xff]
        %v666 = vld [vmem:[#allocation9 + $0x88] sm:$0xff]
        %v667 = vld [vmem:[#allocation9 + $0x90] sm:$0xff]
        %v668 = vld [vmem:[#allocation9 + $0x98] sm:$0xff]
        %v669 = vld [vmem:[#allocation9 + $0xa0] sm:$0xff]
        %v670 = vld [vmem:[#allocation9 + $0xa8] sm:$0xff]
        %v671 = vld [vmem:[#allocation9 + $0xb0] sm:$0xff]
        %v672 = vld [vmem:[#allocation9 + $0xb8] sm:$0xff]
        %v673 = vld [vmem:[#allocation9 + $0xc0] sm:$0xff]
        %v674 = vld [vmem:[#allocation9 + $0xc8] sm:$0xff]
        %v675 = vld [vmem:[#allocation9 + $0xd0] sm:$0xff]
        %v676 = vld [vmem:[#allocation9 + $0xd8] sm:$0xff]
        %v677 = vld [vmem:[#allocation9 + $0xe0] sm:$0xff]
        %v678 = vld [vmem:[#allocation9 + $0xe8] sm:$0xff]
        %v679 = vld [vmem:[#allocation9 + $0xf0] sm:$0xff]
        %v680 = vld [vmem:[#allocation9 + $0xf8] sm:$0xff]
        %v681 = vld [vmem:[#allocation14] sm:$0xff]
        %v682 = vld [vmem:[#allocation16] sm:$0xff]
        %s683 = smul.u32 0, 4
        %s684 = smul.addr %s683, 8
        %s685 = scalar_lea.vmem [#allocation2], %s684
        %v686 = vld [vmem:[%s685] sm:$0xff]
        %v687 = vld [vmem:[%s685 + $0x8] sm:$0xff]
        %v688 = vld [vmem:[%s685 + $0x10] sm:$0xff]
        %v689 = vld [vmem:[%s685 + $0x18] sm:$0xff]
        %v690 = vpack.c.bf16 %v681, %v681
        %v723 = vunpack.c.l.b16 %v649
        %v724 = vunpack.c.h.b16 %v649
        %v725 = vunpack.c.l.b16 %v650
        %v726 = vunpack.c.h.b16 %v650
        %v727 = vunpack.c.l.b16 %v651
        %v728 = vunpack.c.h.b16 %v651
        %v729 = vunpack.c.l.b16 %v652
        %v730 = vunpack.c.h.b16 %v652
        %v731 = vunpack.c.l.b16 %v653
        %v732 = vunpack.c.h.b16 %v653
        %v733 = vunpack.c.l.b16 %v654
        %v734 = vunpack.c.h.b16 %v654
        %v735 = vunpack.c.l.b16 %v655
        %v736 = vunpack.c.h.b16 %v655
        %v737 = vunpack.c.l.b16 %v656
        %v738 = vunpack.c.h.b16 %v656
        %v739 = vunpack.c.l.b16 %v657
        %v740 = vunpack.c.h.b16 %v657
        %v741 = vunpack.c.l.b16 %v658
        %v742 = vunpack.c.h.b16 %v658
        %v743 = vunpack.c.l.b16 %v659
        %v744 = vunpack.c.h.b16 %v659
        %v745 = vunpack.c.l.b16 %v660
        %v746 = vunpack.c.h.b16 %v660
        %v747 = vunpack.c.l.b16 %v661
        %v748 = vunpack.c.h.b16 %v661
        %v749 = vunpack.c.l.b16 %v662
        %v750 = vunpack.c.h.b16 %v662
        %v751 = vunpack.c.l.b16 %v663
        %v752 = vunpack.c.h.b16 %v663
        %v753 = vunpack.c.l.b16 %v664
        %v754 = vunpack.c.h.b16 %v664
        %v755 = vunpack.c.l.b16 %v665
        %v756 = vunpack.c.h.b16 %v665
        %v757 = vunpack.c.l.b16 %v666
        %v758 = vunpack.c.h.b16 %v666
        %v759 = vunpack.c.l.b16 %v667
        %v760 = vunpack.c.h.b16 %v667
        %v761 = vunpack.c.l.b16 %v668
        %v762 = vunpack.c.h.b16 %v668
        %v763 = vunpack.c.l.b16 %v669
        %v764 = vunpack.c.h.b16 %v669
        %v765 = vunpack.c.l.b16 %v670
        %v766 = vunpack.c.h.b16 %v670
        %v767 = vunpack.c.l.b16 %v671
        %v768 = vunpack.c.h.b16 %v671
        %v769 = vunpack.c.l.b16 %v672
        %v770 = vunpack.c.h.b16 %v672
        %v771 = vunpack.c.l.b16 %v673
        %v772 = vunpack.c.h.b16 %v673
        %v773 = vunpack.c.l.b16 %v674
        %v774 = vunpack.c.h.b16 %v674
        %v775 = vunpack.c.l.b16 %v675
        %v776 = vunpack.c.h.b16 %v675
        %v777 = vunpack.c.l.b16 %v676
        %v778 = vunpack.c.h.b16 %v676
        %v779 = vunpack.c.l.b16 %v677
        %v780 = vunpack.c.h.b16 %v677
        %v781 = vunpack.c.l.b16 %v678
        %v782 = vunpack.c.h.b16 %v678
        %v783 = vunpack.c.l.b16 %v679
        %v784 = vunpack.c.h.b16 %v679
        %v785 = vunpack.c.l.b16 %v680
        %v786 = vunpack.c.h.b16 %v680
        %v787 = vpack.c.b16 %v727, %v723
        %v788 = vpack.c.b16 %v728, %v724
        %v789 = vpack.c.b16 %v729, %v725
        %v790 = vpack.c.b16 %v730, %v726
        %v791 = vpack.c.b16 %v735, %v731
        %v792 = vpack.c.b16 %v736, %v732
        %v793 = vpack.c.b16 %v737, %v733
        %v794 = vpack.c.b16 %v738, %v734
        %v795 = vpack.c.b16 %v743, %v739
        %v796 = vpack.c.b16 %v744, %v740
        %v797 = vpack.c.b16 %v745, %v741
        %v798 = vpack.c.b16 %v746, %v742
        %v799 = vpack.c.b16 %v751, %v747
        %v800 = vpack.c.b16 %v752, %v748
        %v801 = vpack.c.b16 %v753, %v749
        %v802 = vpack.c.b16 %v754, %v750
        %v803 = vpack.c.b16 %v759, %v755
        %v804 = vpack.c.b16 %v760, %v756
        %v805 = vpack.c.b16 %v761, %v757
        %v806 = vpack.c.b16 %v762, %v758
        %v807 = vpack.c.b16 %v767, %v763
        %v808 = vpack.c.b16 %v768, %v764
        %v809 = vpack.c.b16 %v769, %v765
        %v810 = vpack.c.b16 %v770, %v766
        %v811 = vpack.c.b16 %v775, %v771
        %v812 = vpack.c.b16 %v776, %v772
        %v813 = vpack.c.b16 %v777, %v773
        %v814 = vpack.c.b16 %v778, %v774
        %v815 = vpack.c.b16 %v783, %v779
        %v816 = vpack.c.b16 %v784, %v780
        %v817 = vpack.c.b16 %v785, %v781
        %v818 = vpack.c.b16 %v786, %v782
        %851 = vmatprep.subr.bf16.mxu0 %v788
        %852 = vmatpush1.bf16.msra.mxu0 %v787
        %853 = vmatprep.subr.bf16.mxu0 %v792
        %854 = vmatpush1.bf16.msra.mxu0 %v791
        %855 = vmatprep.subr.bf16.mxu0 %v796
        %856 = vmatpush1.bf16.msra.mxu0 %v795
        %857 = vmatprep.subr.bf16.mxu0 %v800
        %858 = vmatpush1.bf16.msra.mxu0 %v799
        %859 = vmatprep.subr.bf16.mxu0 %v804
        %860 = vmatpush1.bf16.msra.mxu0 %v803
        %861 = vmatprep.subr.bf16.mxu0 %v808
        %862 = vmatpush1.bf16.msra.mxu0 %v807
        %863 = vmatprep.subr.bf16.mxu0 %v812
        %864 = vmatpush1.bf16.msra.mxu0 %v811
        %865 = vmatprep.subr.bf16.mxu0 %v816
        %866 = vmatpush1.bf16.msra.mxu0 %v815
        %867 = vmatprep.subr.bf16.mxu0 0
        %868 = vmatpush1.bf16.msra.mxu0 0
        %869 = vmatprep.subr.bf16.mxu0 0
        %870 = vmatpush1.bf16.msra.mxu0 0
        %871 = vmatprep.subr.bf16.mxu0 0
        %872 = vmatpush1.bf16.msra.mxu0 0
        %873 = vmatprep.subr.bf16.mxu0 0
        %874 = vmatpush1.bf16.msra.mxu0 0
        %875 = vmatprep.subr.bf16.mxu0 0
        %876 = vmatpush1.bf16.msra.mxu0 0
        %877 = vmatprep.subr.bf16.mxu0 0
        %878 = vmatpush1.bf16.msra.mxu0 0
        %879 = vmatprep.subr.bf16.mxu0 0
        %880 = vmatpush1.bf16.msra.mxu0 0
        %881 = vmatprep.subr.bf16.mxu0 0
        %882 = vmatpush1.bf16.msra.mxu0 0
        %883 = vmatprep.mubr.bf16.mxu0 0
        %884 = vmatmul.mubr.bf16.gmra.mrb[0].mxu0 %v690
        %v885 = vpop.f32.mrb[0].mxu0
        %v886 = vadd.f32 0.0, %v885
        %v887 = vpop.f32.mrb[0].mxu0
        %v888 = vadd.f32 0.0, %v887
        %v889 = vpop.f32.mrb[0].mxu0
        %v890 = vpop.f32.mrb[0].mxu0
        %891 = vdwg.mxu0
        %892 = vmatprep.subr.bf16.mxu0 %v790
        %893 = vmatpush1.bf16.msra.mxu0 %v789
        %894 = vmatprep.subr.bf16.mxu0 %v794
        %895 = vmatpush1.bf16.msra.mxu0 %v793
        %896 = vmatprep.subr.bf16.mxu0 %v798
        %897 = vmatpush1.bf16.msra.mxu0 %v797
        %898 = vmatprep.subr.bf16.mxu0 %v802
        %899 = vmatpush1.bf16.msra.mxu0 %v801
        %900 = vmatprep.subr.bf16.mxu0 %v806
        %901 = vmatpush1.bf16.msra.mxu0 %v805
        %902 = vmatprep.subr.bf16.mxu0 %v810
        %903 = vmatpush1.bf16.msra.mxu0 %v809
        %904 = vmatprep.subr.bf16.mxu0 %v814
        %905 = vmatpush1.bf16.msra.mxu0 %v813
        %906 = vmatprep.subr.bf16.mxu0 %v818
        %907 = vmatpush1.bf16.msra.mxu0 %v817
        %908 = vmatprep.subr.bf16.mxu0 0
        %909 = vmatpush1.bf16.msra.mxu0 0
        %910 = vmatprep.subr.bf16.mxu0 0
        %911 = vmatpush1.bf16.msra.mxu0 0
        %912 = vmatprep.subr.bf16.mxu0 0
        %913 = vmatpush1.bf16.msra.mxu0 0
        %914 = vmatprep.subr.bf16.mxu0 0
        %915 = vmatpush1.bf16.msra.mxu0 0
        %916 = vmatprep.subr.bf16.mxu0 0
        %917 = vmatpush1.bf16.msra.mxu0 0
        %918 = vmatprep.subr.bf16.mxu0 0
        %919 = vmatpush1.bf16.msra.mxu0 0
        %920 = vmatprep.subr.bf16.mxu0 0
        %921 = vmatpush1.bf16.msra.mxu0 0
        %922 = vmatprep.subr.bf16.mxu0 0
        %923 = vmatpush1.bf16.msra.mxu0 0
        %924 = vmatprep.mubr.bf16.mxu0 0
        %925 = vmatmul.mubr.bf16.gmra.mrb[0].mxu0 %v690
        %v926 = vpop.f32.mrb[0].mxu0
        %v927 = vadd.f32 0.0, %v926
        %v928 = vpop.f32.mrb[0].mxu0
        %v929 = vadd.f32 0.0, %v928
        %v930 = vpop.f32.mrb[0].mxu0
        %v931 = vpop.f32.mrb[0].mxu0
        %932 = vdwg.mxu0
        %v933 = vadd.f32 %v686, %v886
        %v934 = vadd.f32 %v687, %v888
        %v935 = vadd.f32 %v688, %v927
        %v936 = vadd.f32 %v689, %v929
        %v937 = vxor.u32 %v933, 2147483648
        %v938 = vxor.u32 %v934, 2147483648
        %v939 = vxor.u32 %v935, 2147483648
        %v940 = vmul.f32 %v937, 1.442695
        %v941 = vpow.pop %v940
        %v942 = vmul.f32 %v938, 1.442695
        %v943 = vpow.pop %v942
        %v944 = vmul.f32 %v939, 1.442695
        %v945 = vpow.pop %v944
        %v946 = vadd.f32 %v941, 1.0
        %v947 = vadd.f32 %v943, 1.0
        %v948 = vadd.f32 %v945, 1.0
        %v949 = vrcp.pop %v946
        %v950 = vmul.f32 1.0, %v949
        %v951 = vrcp.pop %v947
        %v952 = vmul.f32 1.0, %v951
        %v953 = vrcp.pop %v948
        %v954 = vmul.f32 1.0, %v953
        %v955 = vtanh.pop %v936
        %v956 = vmul.f32 %v952, %v682
        %v957 = vmul.f32 %v950, %v955
        %v958 = vadd.f32 %v956, %v957
        %v959 = vtanh.pop %v958
        %v960 = vmul.f32 %v954, %v959
        %961 = vst [vmem:[#allocation3] sm:$0xff] %v960
        %s962 = smul.u32 1, 4
        %s963 = smul.addr %s962, 8
        %s964 = scalar_lea.vmem [#allocation2], %s963
        %v965 = vld [vmem:[%s964] sm:$0xff]
        %v966 = vld [vmem:[%s964 + $0x8] sm:$0xff]
        %v967 = vld [vmem:[%s964 + $0x10] sm:$0xff]
        %v968 = vld [vmem:[%s964 + $0x18] sm:$0xff]
        %v969 = vpack.c.bf16 %v960, %v960
        %970 = vmatprep.subr.bf16.mxu0 %v788
        %971 = vmatpush1.bf16.msra.mxu0 %v787
        %972 = vmatprep.subr.bf16.mxu0 %v792
        %973 = vmatpush1.bf16.msra.mxu0 %v791
        %974 = vmatprep.subr.bf16.mxu0 %v796
        %975 = vmatpush1.bf16.msra.mxu0 %v795
        %976 = vmatprep.subr.bf16.mxu0 %v800
        %977 = vmatpush1.bf16.msra.mxu0 %v799
        %978 = vmatprep.subr.bf16.mxu0 %v804
        %979 = vmatpush1.bf16.msra.mxu0 %v803
        %980 = vmatprep.subr.bf16.mxu0 %v808
        %981 = vmatpush1.bf16.msra.mxu0 %v807
        %982 = vmatprep.subr.bf16.mxu0 %v812
        %983 = vmatpush1.bf16.msra.mxu0 %v811
        %984 = vmatprep.subr.bf16.mxu0 %v816
        %985 = vmatpush1.bf16.msra.mxu0 %v815
        %986 = vmatprep.subr.bf16.mxu0 0
        %987 = vmatpush1.bf16.msra.mxu0 0
        %988 = vmatprep.subr.bf16.mxu0 0
        %989 = vmatpush1.bf16.msra.mxu0 0
        %990 = vmatprep.subr.bf16.mxu0 0
        %991 = vmatpush1.bf16.msra.mxu0 0
        %992 = vmatprep.subr.bf16.mxu0 0
        %993 = vmatpush1.bf16.msra.mxu0 0
        %994 = vmatprep.subr.bf16.mxu0 0
        %995 = vmatpush1.bf16.msra.mxu0 0
        %996 = vmatprep.subr.bf16.mxu0 0
        %997 = vmatpush1.bf16.msra.mxu0 0
        %998 = vmatprep.subr.bf16.mxu0 0
        %999 = vmatpush1.bf16.msra.mxu0 0
        %1000 = vmatprep.subr.bf16.mxu0 0
        %1001 = vmatpush1.bf16.msra.mxu0 0
        %1002 = vmatprep.mubr.bf16.mxu0 0
        %1003 = vmatmul.mubr.bf16.gmra.mrb[0].mxu0 %v969
        %v1004 = vpop.f32.mrb[0].mxu0
        %v1005 = vadd.f32 0.0, %v1004
        %v1006 = vpop.f32.mrb[0].mxu0
        %v1007 = vadd.f32 0.0, %v1006
        %v1008 = vpop.f32.mrb[0].mxu0
        %v1009 = vpop.f32.mrb[0].mxu0
        %1010 = vdwg.mxu0
        %1011 = vmatprep.subr.bf16.mxu0 %v790
        %1012 = vmatpush1.bf16.msra.mxu0 %v789
        %1013 = vmatprep.subr.bf16.mxu0 %v794
        %1014 = vmatpush1.bf16.msra.mxu0 %v793
        %1015 = vmatprep.subr.bf16.mxu0 %v798
        %1016 = vmatpush1.bf16.msra.mxu0 %v797
        %1017 = vmatprep.subr.bf16.mxu0 %v802
        %1018 = vmatpush1.bf16.msra.mxu0 %v801
        %1019 = vmatprep.subr.bf16.mxu0 %v806
        %1020 = vmatpush1.bf16.msra.mxu0 %v805
        %1021 = vmatprep.subr.bf16.mxu0 %v810
        %1022 = vmatpush1.bf16.msra.mxu0 %v809
        %1023 = vmatprep.subr.bf16.mxu0 %v814
        %1024 = vmatpush1.bf16.msra.mxu0 %v813
        %1025 = vmatprep.subr.bf16.mxu0 %v818
        %1026 = vmatpush1.bf16.msra.mxu0 %v817
        %1027 = vmatprep.subr.bf16.mxu0 0
        %1028 = vmatpush1.bf16.msra.mxu0 0
        %1029 = vmatprep.subr.bf16.mxu0 0
        %1030 = vmatpush1.bf16.msra.mxu0 0
        %1031 = vmatprep.subr.bf16.mxu0 0
        %1032 = vmatpush1.bf16.msra.mxu0 0
        %1033 = vmatprep.subr.bf16.mxu0 0
        %1034 = vmatpush1.bf16.msra.mxu0 0
        %1035 = vmatprep.subr.bf16.mxu0 0
        %1036 = vmatpush1.bf16.msra.mxu0 0
        %1037 = vmatprep.subr.bf16.mxu0 0
        %1038 = vmatpush1.bf16.msra.mxu0 0
        %1039 = vmatprep.subr.bf16.mxu0 0
        %1040 = vmatpush1.bf16.msra.mxu0 0
        %1041 = vmatprep.subr.bf16.mxu0 0
        %1042 = vmatpush1.bf16.msra.mxu0 0
        %1043 = vmatprep.mubr.bf16.mxu0 0
        %1044 = vmatmul.mubr.bf16.gmra.mrb[0].mxu0 %v969
        %v1045 = vpop.f32.mrb[0].mxu0
        %v1046 = vadd.f32 0.0, %v1045
        %v1047 = vpop.f32.mrb[0].mxu0
        %v1048 = vadd.f32 0.0, %v1047
        %v1049 = vpop.f32.mrb[0].mxu0
        %v1050 = vpop.f32.mrb[0].mxu0
        %1051 = vdwg.mxu0
        %v1052 = vadd.f32 %v965, %v1005
        %v1053 = vadd.f32 %v966, %v1007
        %v1054 = vadd.f32 %v967, %v1046
        %v1055 = vadd.f32 %v968, %v1048
        %v1056 = vxor.u32 %v1052, 2147483648
        %v1057 = vxor.u32 %v1053, 2147483648
        %v1058 = vxor.u32 %v1054, 2147483648
        %v1059 = vmul.f32 %v1056, 1.442695
        %v1060 = vpow.pop %v1059
        %v1061 = vmul.f32 %v1057, 1.442695
        %v1062 = vpow.pop %v1061
        %v1063 = vmul.f32 %v1058, 1.442695
        %v1064 = vpow.pop %v1063
        %v1065 = vadd.f32 %v1060, 1.0
        %v1066 = vadd.f32 %v1062, 1.0
        %v1067 = vadd.f32 %v1064, 1.0
        %v1068 = vrcp.pop %v1065
        %v1069 = vmul.f32 1.0, %v1068
        %v1070 = vrcp.pop %v1066
        %v1071 = vmul.f32 1.0, %v1070
        %v1072 = vrcp.pop %v1067
        %v1073 = vmul.f32 1.0, %v1072
        %v1074 = vtanh.pop %v1055
        %v1075 = vmul.f32 %v1071, %v958
        %v1076 = vmul.f32 %v1069, %v1074
        %v1077 = vadd.f32 %v1075, %v1076
        %v1078 = vtanh.pop %v1077
        %v1079 = vmul.f32 %v1073, %v1078
        %s1080 = scalar_lea.vmem [#allocation3], 8
        %1081 = vst [vmem:[%s1080] sm:$0xff] %v1079
        %s1082 = smul.u32 2, 4
        %s1083 = smul.addr %s1082, 8
        %s1084 = scalar_lea.vmem [#allocation2], %s1083
        %v1085 = vld [vmem:[%s1084] sm:$0xff]
        %v1086 = vld [vmem:[%s1084 + $0x8] sm:$0xff]
        %v1087 = vld [vmem:[%s1084 + $0x10] sm:$0xff]
        %v1088 = vld [vmem:[%s1084 + $0x18] sm:$0xff]
        %v1089 = vpack.c.bf16 %v1079, %v1079
        %1090 = vmatprep.subr.bf16.mxu0 %v788
        %1091 = vmatpush1.bf16.msra.mxu0 %v787
        %1092 = vmatprep.subr.bf16.mxu0 %v792
        %1093 = vmatpush1.bf16.msra.mxu0 %v791
        %1094 = vmatprep.subr.bf16.mxu0 %v796
        %1095 = vmatpush1.bf16.msra.mxu0 %v795
        %1096 = vmatprep.subr.bf16.mxu0 %v800
        %1097 = vmatpush1.bf16.msra.mxu0 %v799
        %1098 = vmatprep.subr.bf16.mxu0 %v804
        %1099 = vmatpush1.bf16.msra.mxu0 %v803
        %1100 = vmatprep.subr.bf16.mxu0 %v808
        %1101 = vmatpush1.bf16.msra.mxu0 %v807
        %1102 = vmatprep.subr.bf16.mxu0 %v812
        %1103 = vmatpush1.bf16.msra.mxu0 %v811
        %1104 = vmatprep.subr.bf16.mxu0 %v816
        %1105 = vmatpush1.bf16.msra.mxu0 %v815
        %1106 = vmatprep.subr.bf16.mxu0 0
        %1107 = vmatpush1.bf16.msra.mxu0 0
        %1108 = vmatprep.subr.bf16.mxu0 0
        %1109 = vmatpush1.bf16.msra.mxu0 0
        %1110 = vmatprep.subr.bf16.mxu0 0
        %1111 = vmatpush1.bf16.msra.mxu0 0
        %1112 = vmatprep.subr.bf16.mxu0 0
        %1113 = vmatpush1.bf16.msra.mxu0 0
        %1114 = vmatprep.subr.bf16.mxu0 0
        %1115 = vmatpush1.bf16.msra.mxu0 0
        %1116 = vmatprep.subr.bf16.mxu0 0
        %1117 = vmatpush1.bf16.msra.mxu0 0
        %1118 = vmatprep.subr.bf16.mxu0 0
        %1119 = vmatpush1.bf16.msra.mxu0 0
        %1120 = vmatprep.subr.bf16.mxu0 0
        %1121 = vmatpush1.bf16.msra.mxu0 0
        %1122 = vmatprep.mubr.bf16.mxu0 0
        %1123 = vmatmul.mubr.bf16.gmra.mrb[0].mxu0 %v1089
        %v1124 = vpop.f32.mrb[0].mxu0
        %v1125 = vadd.f32 0.0, %v1124
        %v1126 = vpop.f32.mrb[0].mxu0
        %v1127 = vadd.f32 0.0, %v1126
        %v1128 = vpop.f32.mrb[0].mxu0
        %v1129 = vpop.f32.mrb[0].mxu0
        %1130 = vdwg.mxu0
        %1131 = vmatprep.subr.bf16.mxu0 %v790
        %1132 = vmatpush1.bf16.msra.mxu0 %v789
        %1133 = vmatprep.subr.bf16.mxu0 %v794
        %1134 = vmatpush1.bf16.msra.mxu0 %v793
        %1135 = vmatprep.subr.bf16.mxu0 %v798
        %1136 = vmatpush1.bf16.msra.mxu0 %v797
        %1137 = vmatprep.subr.bf16.mxu0 %v802
        %1138 = vmatpush1.bf16.msra.mxu0 %v801
        %1139 = vmatprep.subr.bf16.mxu0 %v806
        %1140 = vmatpush1.bf16.msra.mxu0 %v805
        %1141 = vmatprep.subr.bf16.mxu0 %v810
        %1142 = vmatpush1.bf16.msra.mxu0 %v809
        %1143 = vmatprep.subr.bf16.mxu0 %v814
        %1144 = vmatpush1.bf16.msra.mxu0 %v813
        %1145 = vmatprep.subr.bf16.mxu0 %v818
        %1146 = vmatpush1.bf16.msra.mxu0 %v817
        %1147 = vmatprep.subr.bf16.mxu0 0
        %1148 = vmatpush1.bf16.msra.mxu0 0
        %1149 = vmatprep.subr.bf16.mxu0 0
        %1150 = vmatpush1.bf16.msra.mxu0 0
        %1151 = vmatprep.subr.bf16.mxu0 0
        %1152 = vmatpush1.bf16.msra.mxu0 0
        %1153 = vmatprep.subr.bf16.mxu0 0
        %1154 = vmatpush1.bf16.msra.mxu0 0
        %1155 = vmatprep.subr.bf16.mxu0 0
        %1156 = vmatpush1.bf16.msra.mxu0 0
        %1157 = vmatprep.subr.bf16.mxu0 0
        %1158 = vmatpush1.bf16.msra.mxu0 0
        %1159 = vmatprep.subr.bf16.mxu0 0
        %1160 = vmatpush1.bf16.msra.mxu0 0
        %1161 = vmatprep.subr.bf16.mxu0 0
        %1162 = vmatpush1.bf16.msra.mxu0 0
        %1163 = vmatprep.mubr.bf16.mxu0 0
        %1164 = vmatmul.mubr.bf16.gmra.mrb[0].mxu0 %v1089
        %v1165 = vpop.f32.mrb[0].mxu0
        %v1166 = vadd.f32 0.0, %v1165
        %v1167 = vpop.f32.mrb[0].mxu0
        %v1168 = vadd.f32 0.0, %v1167
        %v1169 = vpop.f32.mrb[0].mxu0
        %v1170 = vpop.f32.mrb[0].mxu0
        %1171 = vdwg.mxu0
        %v1172 = vadd.f32 %v1085, %v1125
        %v1173 = vadd.f32 %v1086, %v1127
        %v1174 = vadd.f32 %v1087, %v1166
        %v1175 = vadd.f32 %v1088, %v1168
        %v1176 = vxor.u32 %v1172, 2147483648
        %v1177 = vxor.u32 %v1173, 2147483648
        %v1178 = vxor.u32 %v1174, 2147483648
        %v1179 = vmul.f32 %v1176, 1.442695
        %v1180 = vpow.pop %v1179
        %v1181 = vmul.f32 %v1177, 1.442695
        %v1182 = vpow.pop %v1181
        %v1183 = vmul.f32 %v1178, 1.442695
        %v1184 = vpow.pop %v1183
        %v1185 = vadd.f32 %v1180, 1.0
        %v1186 = vadd.f32 %v1182, 1.0
        %v1187 = vadd.f32 %v1184, 1.0
        %v1188 = vrcp.pop %v1185
        %v1189 = vmul.f32 1.0, %v1188
        %v1190 = vrcp.pop %v1186
        %v1191 = vmul.f32 1.0, %v1190
        %v1192 = vrcp.pop %v1187
        %v1193 = vmul.f32 1.0, %v1192
        %v1194 = vtanh.pop %v1175
        %v1195 = vmul.f32 %v1191, %v1077
        %v1196 = vmul.f32 %v1189, %v1194
        %v1197 = vadd.f32 %v1195, %v1196
        %v1198 = vtanh.pop %v1197
        %v1199 = vmul.f32 %v1193, %v1198
        %s1200 = scalar_lea.vmem [#allocation3], 16
        %1201 = vst [vmem:[%s1200] sm:$0xff] %v1199
        %s1202 = smul.u32 3, 4
        %s1203 = smul.addr %s1202, 8
        %s1204 = scalar_lea.vmem [#allocation2], %s1203
        %v1205 = vld [vmem:[%s1204] sm:$0xff]
        %v1206 = vld [vmem:[%s1204 + $0x8] sm:$0xff]
        %v1207 = vld [vmem:[%s1204 + $0x10] sm:$0xff]
        %v1208 = vld [vmem:[%s1204 + $0x18] sm:$0xff]
        %v1209 = vpack.c.bf16 %v1199, %v1199
        %1210 = vmatprep.subr.bf16.mxu0 %v788
        %1211 = vmatpush1.bf16.msra.mxu0 %v787
        %1212 = vmatprep.subr.bf16.mxu0 %v792
        %1213 = vmatpush1.bf16.msra.mxu0 %v791
        %1214 = vmatprep.subr.bf16.mxu0 %v796
        %1215 = vmatpush1.bf16.msra.mxu0 %v795
        %1216 = vmatprep.subr.bf16.mxu0 %v800
        %1217 = vmatpush1.bf16.msra.mxu0 %v799
        %1218 = vmatprep.subr.bf16.mxu0 %v804
        %1219 = vmatpush1.bf16.msra.mxu0 %v803
        %1220 = vmatprep.subr.bf16.mxu0 %v808
        %1221 = vmatpush1.bf16.msra.mxu0 %v807
        %1222 = vmatprep.subr.bf16.mxu0 %v812
        %1223 = vmatpush1.bf16.msra.mxu0 %v811
        %1224 = vmatprep.subr.bf16.mxu0 %v816
        %1225 = vmatpush1.bf16.msra.mxu0 %v815
        %1226 = vmatprep.subr.bf16.mxu0 0
        %1227 = vmatpush1.bf16.msra.mxu0 0
        %1228 = vmatprep.subr.bf16.mxu0 0
        %1229 = vmatpush1.bf16.msra.mxu0 0
        %1230 = vmatprep.subr.bf16.mxu0 0
        %1231 = vmatpush1.bf16.msra.mxu0 0
        %1232 = vmatprep.subr.bf16.mxu0 0
        %1233 = vmatpush1.bf16.msra.mxu0 0
        %1234 = vmatprep.subr.bf16.mxu0 0
        %1235 = vmatpush1.bf16.msra.mxu0 0
        %1236 = vmatprep.subr.bf16.mxu0 0
        %1237 = vmatpush1.bf16.msra.mxu0 0
        %1238 = vmatprep.subr.bf16.mxu0 0
        %1239 = vmatpush1.bf16.msra.mxu0 0
        %1240 = vmatprep.subr.bf16.mxu0 0
        %1241 = vmatpush1.bf16.msra.mxu0 0
        %1242 = vmatprep.mubr.bf16.mxu0 0
        %1243 = vmatmul.mubr.bf16.gmra.mrb[0].mxu0 %v1209
        %v1244 = vpop.f32.mrb[0].mxu0
        %v1245 = vadd.f32 0.0, %v1244
        %v1246 = vpop.f32.mrb[0].mxu0
        %v1247 = vadd.f32 0.0, %v1246
        %v1248 = vpop.f32.mrb[0].mxu0
        %v1249 = vpop.f32.mrb[0].mxu0
        %1250 = vdwg.mxu0
        %1251 = vmatprep.subr.bf16.mxu0 %v790
        %1252 = vmatpush1.bf16.msra.mxu0 %v789
        %1253 = vmatprep.subr.bf16.mxu0 %v794
        %1254 = vmatpush1.bf16.msra.mxu0 %v793
        %1255 = vmatprep.subr.bf16.mxu0 %v798
        %1256 = vmatpush1.bf16.msra.mxu0 %v797
        %1257 = vmatprep.subr.bf16.mxu0 %v802
        %1258 = vmatpush1.bf16.msra.mxu0 %v801
        %1259 = vmatprep.subr.bf16.mxu0 %v806
        %1260 = vmatpush1.bf16.msra.mxu0 %v805
        %1261 = vmatprep.subr.bf16.mxu0 %v810
        %1262 = vmatpush1.bf16.msra.mxu0 %v809
        %1263 = vmatprep.subr.bf16.mxu0 %v814
        %1264 = vmatpush1.bf16.msra.mxu0 %v813
        %1265 = vmatprep.subr.bf16.mxu0 %v818
        %1266 = vmatpush1.bf16.msra.mxu0 %v817
        %1267 = vmatprep.subr.bf16.mxu0 0
        %1268 = vmatpush1.bf16.msra.mxu0 0
        %1269 = vmatprep.subr.bf16.mxu0 0
        %1270 = vmatpush1.bf16.msra.mxu0 0
        %1271 = vmatprep.subr.bf16.mxu0 0
        %1272 = vmatpush1.bf16.msra.mxu0 0
        %1273 = vmatprep.subr.bf16.mxu0 0
        %1274 = vmatpush1.bf16.msra.mxu0 0
        %1275 = vmatprep.subr.bf16.mxu0 0
        %1276 = vmatpush1.bf16.msra.mxu0 0
        %1277 = vmatprep.subr.bf16.mxu0 0
        %1278 = vmatpush1.bf16.msra.mxu0 0
        %1279 = vmatprep.subr.bf16.mxu0 0
        %1280 = vmatpush1.bf16.msra.mxu0 0
        %1281 = vmatprep.subr.bf16.mxu0 0
        %1282 = vmatpush1.bf16.msra.mxu0 0
        %1283 = vmatprep.mubr.bf16.mxu0 0
        %1284 = vmatmul.mubr.bf16.gmra.mrb[0].mxu0 %v1209
        %v1285 = vpop.f32.mrb[0].mxu0
        %v1286 = vadd.f32 0.0, %v1285
        %v1287 = vpop.f32.mrb[0].mxu0
        %v1288 = vadd.f32 0.0, %v1287
        %v1289 = vpop.f32.mrb[0].mxu0
        %v1290 = vpop.f32.mrb[0].mxu0
        %1291 = vdwg.mxu0
        %v1292 = vadd.f32 %v1205, %v1245
        %v1293 = vadd.f32 %v1206, %v1247
        %v1294 = vadd.f32 %v1207, %v1286
        %v1295 = vadd.f32 %v1208, %v1288
        %v1296 = vxor.u32 %v1292, 2147483648
        %v1297 = vxor.u32 %v1293, 2147483648
        %v1298 = vxor.u32 %v1294, 2147483648
        %v1299 = vmul.f32 %v1296, 1.442695
        %v1300 = vpow.pop %v1299
        %v1301 = vmul.f32 %v1297, 1.442695
        %v1302 = vpow.pop %v1301
        %v1303 = vmul.f32 %v1298, 1.442695
        %v1304 = vpow.pop %v1303
        %v1305 = vadd.f32 %v1300, 1.0
        %v1306 = vadd.f32 %v1302, 1.0
        %v1307 = vadd.f32 %v1304, 1.0
        %v1308 = vrcp.pop %v1305
        %v1309 = vmul.f32 1.0, %v1308
        %v1310 = vrcp.pop %v1306
        %v1311 = vmul.f32 1.0, %v1310
        %v1312 = vrcp.pop %v1307
        %v1313 = vmul.f32 1.0, %v1312
        %v1314 = vtanh.pop %v1295
        %v1315 = vmul.f32 %v1311, %v1197
        %v1316 = vmul.f32 %v1309, %v1314
        %v1317 = vadd.f32 %v1315, %v1316
        %v1318 = vtanh.pop %v1317
        %v1319 = vmul.f32 %v1313, %v1318
        %s1320 = scalar_lea.vmem [#allocation3], 24
        %1321 = vst [vmem:[%s1320] sm:$0xff] %v1319
        %1322 = vst [vmem:[#allocation14] sm:$0xff] %v1319
        %1323 = vst [vmem:[#allocation16] sm:$0xff] %v1317
        %v1324 = vld [vmem:[#allocation3] sm:$0xff]
        %v1325 = vld [vmem:[#allocation3 + $0x8] sm:$0xff]
        %v1326 = vld [vmem:[#allocation3 + $0x10] sm:$0xff]
        %v1327 = vld [vmem:[#allocation3 + $0x18] sm:$0xff]
        %v1328 = vld [vmem:[#allocation12] sm:$0xff]
        %v1329 = vld [vmem:[#allocation12 + $0x8] sm:$0xff]
        %v1330 = vld [vmem:[#allocation12 + $0x10] sm:$0xff]
        %v1331 = vld [vmem:[#allocation12 + $0x18] sm:$0xff]
        %v1332 = vld [vmem:[#allocation12 + $0x20] sm:$0xff]
        %v1333 = vld [vmem:[#allocation12 + $0x28] sm:$0xff]
        %v1334 = vld [vmem:[#allocation12 + $0x30] sm:$0xff]
        %v1335 = vld [vmem:[#allocation12 + $0x38] sm:$0xff]
        %v1336 = vld [vmem:[#allocation12 + $0x40] sm:$0xff]
        %v1337 = vld [vmem:[#allocation12 + $0x48] sm:$0xff]
        %v1338 = vld [vmem:[#allocation12 + $0x50] sm:$0xff]
        %v1339 = vld [vmem:[#allocation12 + $0x58] sm:$0xff]
        %v1340 = vld [vmem:[#allocation12 + $0x60] sm:$0xff]
        %v1341 = vld [vmem:[#allocation12 + $0x68] sm:$0xff]
        %v1342 = vld [vmem:[#allocation12 + $0x70] sm:$0xff]
        %v1343 = vld [vmem:[#allocation12 + $0x78] sm:$0xff]
        %1344 = vmatprep.subr.mxu0 0.0
        %1345 = vmatpush1.msra.mxu0 %v1328
        %1346 = vmatprep.subr.mxu0 0.0
        %1347 = vmatpush1.msra.mxu0 %v1329
        %1348 = vmatprep.subr.mxu0 0.0
        %1349 = vmatpush1.msra.mxu0 %v1330
        %1350 = vmatprep.subr.mxu0 0.0
        %1351 = vmatpush1.msra.mxu0 %v1331
        %1352 = vmatprep.subr.mxu0 0.0
        %1353 = vmatpush1.msra.mxu0 %v1332
        %1354 = vmatprep.subr.mxu0 0.0
        %1355 = vmatpush1.msra.mxu0 %v1333
        %1356 = vmatprep.subr.mxu0 0.0
        %1357 = vmatpush1.msra.mxu0 %v1334
        %1358 = vmatprep.subr.mxu0 0.0
        %1359 = vmatpush1.msra.mxu0 %v1335
        %1360 = vmatprep.subr.mxu0 0.0
        %1361 = vmatpush1.msra.mxu0 %v1336
        %1362 = vmatprep.subr.mxu0 0.0
        %1363 = vmatpush1.msra.mxu0 %v1337
        %1364 = vmatprep.subr.mxu0 0.0
        %1365 = vmatpush1.msra.mxu0 %v1338
        %1366 = vmatprep.subr.mxu0 0.0
        %1367 = vmatpush1.msra.mxu0 %v1339
        %1368 = vmatprep.subr.mxu0 0.0
        %1369 = vmatpush1.msra.mxu0 %v1340
        %1370 = vmatprep.subr.mxu0 0.0
        %1371 = vmatpush1.msra.mxu0 %v1341
        %1372 = vmatprep.subr.mxu0 0.0
        %1373 = vmatpush1.msra.mxu0 %v1342
        %1374 = vmatprep.subr.mxu0 0.0
        %1375 = vmatpush1.msra.mxu0 %v1343
        %1376 = vmatprep.subr.mxu0 0.0
        %1377 = vmatpush1.msra.mxu0 0.0
        %1378 = vmatprep.subr.mxu0 0.0
        %1379 = vmatpush1.msra.mxu0 0.0
        %1380 = vmatprep.subr.mxu0 0.0
        %1381 = vmatpush1.msra.mxu0 0.0
        %1382 = vmatprep.subr.mxu0 0.0
        %1383 = vmatpush1.msra.mxu0 0.0
        %1384 = vmatprep.subr.mxu0 0.0
        %1385 = vmatpush1.msra.mxu0 0.0
        %1386 = vmatprep.subr.mxu0 0.0
        %1387 = vmatpush1.msra.mxu0 0.0
        %1388 = vmatprep.subr.mxu0 0.0
        %1389 = vmatpush1.msra.mxu0 0.0
        %1390 = vmatprep.subr.mxu0 0.0
        %1391 = vmatpush1.msra.mxu0 0.0
        %1392 = vmatprep.subr.mxu0 0.0
        %1393 = vmatpush1.msra.mxu0 0.0
        %1394 = vmatprep.subr.mxu0 0.0
        %1395 = vmatpush1.msra.mxu0 0.0
        %1396 = vmatprep.subr.mxu0 0.0
        %1397 = vmatpush1.msra.mxu0 0.0
        %1398 = vmatprep.subr.mxu0 0.0
        %1399 = vmatpush1.msra.mxu0 0.0
        %1400 = vmatprep.subr.mxu0 0.0
        %1401 = vmatpush1.msra.mxu0 0.0
        %1402 = vmatprep.subr.mxu0 0.0
        %1403 = vmatpush1.msra.mxu0 0.0
        %1404 = vmatprep.subr.mxu0 0.0
        %1405 = vmatpush1.msra.mxu0 0.0
        %1406 = vmatprep.subr.mxu0 0.0
        %1407 = vmatpush1.msra.mxu0 0.0
        %1408 = vmatprep.mubr.f32.mxu0 0.0
        %1409 = vmatmul.mubr.f32.gmra.mrb[0].mxu0 %v1324
        %v1410 = vpop.f32.mrb[0].mxu0
        %v1411 = vadd.f32 0.0, %v1410
        %v1412 = vpop.f32.mrb[0].mxu0
        %1413 = vmatprep.mubr.f32.mxu0 0.0
        %1414 = vmatmul.mubr.f32.gmra.mrb[0].mxu0 %v1325
        %v1415 = vpop.f32.mrb[0].mxu0
        %v1416 = vadd.f32 0.0, %v1415
        %v1417 = vpop.f32.mrb[0].mxu0
        %1418 = vmatprep.mubr.f32.mxu0 0.0
        %1419 = vmatmul.mubr.f32.gmra.mrb[0].mxu0 %v1326
        %v1420 = vpop.f32.mrb[0].mxu0
        %v1421 = vadd.f32 0.0, %v1420
        %v1422 = vpop.f32.mrb[0].mxu0
        %1423 = vmatprep.mubr.f32.mxu0 0.0
        %1424 = vmatmul.mubr.f32.gmra.mrb[0].mxu0 %v1327
        %v1425 = vpop.f32.mrb[0].mxu0
        %v1426 = vadd.f32 0.0, %v1425
        %v1427 = vpop.f32.mrb[0].mxu0
        %1428 = vdwg.mxu0
        %1433 = vrot.lane.b32.xlu0 %v1411, 96
        %v1434 = vpop.permute.xlu0 %1433
        %1435 = vrot.lane.b32.xlu0 %v1416, 96
        %v1436 = vpop.permute.xlu0 %1435
        %1437 = vrot.lane.b32.xlu0 %v1421, 96
        %v1438 = vpop.permute.xlu0 %1437
        %1439 = vrot.lane.b32.xlu0 %v1426, 96
        %v1440 = vpop.permute.xlu0 %1439
        %v1445 = vmax.f32 %v1411, %v1434
        %v1446 = vmax.f32 %v1416, %v1436
        %v1447 = vmax.f32 %v1421, %v1438
        %v1448 = vmax.f32 %v1426, %v1440
        %1453 = vrot.lane.b32.xlu0 %v1445, 64
        %v1454 = vpop.permute.xlu0 %1453
        %1455 = vrot.lane.b32.xlu0 %v1446, 64
        %v1456 = vpop.permute.xlu0 %1455
        %1457 = vrot.lane.b32.xlu0 %v1447, 64
        %v1458 = vpop.permute.xlu0 %1457
        %1459 = vrot.lane.b32.xlu0 %v1448, 64
        %v1460 = vpop.permute.xlu0 %1459
        %v1465 = vmax.f32 %v1445, %v1454
        %v1466 = vmax.f32 %v1446, %v1456
        %v1467 = vmax.f32 %v1447, %v1458
        %v1468 = vmax.f32 %v1448, %v1460
        %v1469 = vld [vmem:[%s7] sm:$0xff]
        %v1470 = vld [vmem:[%s7 + $0x8] sm:$0xff]
        %v1471 = vld [vmem:[%s7 + $0x10] sm:$0xff]
        %v1472 = vld [vmem:[%s7 + $0x18] sm:$0xff]
        %v1473 = vld [vmem:[%s8] sm:$0x1]
        %v1475 = vlaneseq
        %v1476 = vshrl.u32 %v1475, 7
        %v1477 = vsub.s32 0, %v1476
        %v1478 = vrot.slane %v1473, %v1477
        %vm1480 = vcmask 261120
        %v1482 = vsel %vm1480, %v1465, 0
        %v1485 = vsel %vm1480, %v1466, 0
        %v1488 = vsel %vm1480, %v1467, 0
        %v1491 = vsel %vm1480, %v1468, 0
        %1493 = vmatprep.subr.mxu0 0.0
        %1494 = vmatpush1.msra.mxu0 %v1469
        %1495 = vmatprep.subr.mxu0 0.0
        %1496 = vmatpush1.msra.mxu0 %v1470
        %1497 = vmatprep.subr.mxu0 0.0
        %1498 = vmatpush1.msra.mxu0 %v1471
        %1499 = vmatprep.subr.mxu0 0.0
        %1500 = vmatpush1.msra.mxu0 %v1472
        %1501 = vmatprep.subr.mxu0 0.0
        %1502 = vmatpush1.msra.mxu0 0.0
        %1503 = vmatprep.subr.mxu0 0.0
        %1504 = vmatpush1.msra.mxu0 0.0
        %1505 = vmatprep.subr.mxu0 0.0
        %1506 = vmatpush1.msra.mxu0 0.0
        %1507 = vmatprep.subr.mxu0 0.0
        %1508 = vmatpush1.msra.mxu0 0.0
        %1509 = vmatprep.subr.mxu0 0.0
        %1510 = vmatpush1.msra.mxu0 0.0
        %1511 = vmatprep.subr.mxu0 0.0
        %1512 = vmatpush1.msra.mxu0 0.0
        %1513 = vmatprep.subr.mxu0 0.0
        %1514 = vmatpush1.msra.mxu0 0.0
        %1515 = vmatprep.subr.mxu0 0.0
        %1516 = vmatpush1.msra.mxu0 0.0
        %1517 = vmatprep.subr.mxu0 0.0
        %1518 = vmatpush1.msra.mxu0 0.0
        %1519 = vmatprep.subr.mxu0 0.0
        %1520 = vmatpush1.msra.mxu0 0.0
        %1521 = vmatprep.subr.mxu0 0.0
        %1522 = vmatpush1.msra.mxu0 0.0
        %1523 = vmatprep.subr.mxu0 0.0
        %1524 = vmatpush1.msra.mxu0 0.0
        %1525 = vmatprep.subr.mxu0 0.0
        %1526 = vmatpush1.msra.mxu0 0.0
        %1527 = vmatprep.subr.mxu0 0.0
        %1528 = vmatpush1.msra.mxu0 0.0
        %1529 = vmatprep.subr.mxu0 0.0
        %1530 = vmatpush1.msra.mxu0 0.0
        %1531 = vmatprep.subr.mxu0 0.0
        %1532 = vmatpush1.msra.mxu0 0.0
        %1533 = vmatprep.subr.mxu0 0.0
        %1534 = vmatpush1.msra.mxu0 0.0
        %1535 = vmatprep.subr.mxu0 0.0
        %1536 = vmatpush1.msra.mxu0 0.0
        %1537 = vmatprep.subr.mxu0 0.0
        %1538 = vmatpush1.msra.mxu0 0.0
        %1539 = vmatprep.subr.mxu0 0.0
        %1540 = vmatpush1.msra.mxu0 0.0
        %1541 = vmatprep.subr.mxu0 0.0
        %1542 = vmatpush1.msra.mxu0 0.0
        %1543 = vmatprep.subr.mxu0 0.0
        %1544 = vmatpush1.msra.mxu0 0.0
        %1545 = vmatprep.subr.mxu0 0.0
        %1546 = vmatpush1.msra.mxu0 0.0
        %1547 = vmatprep.subr.mxu0 0.0
        %1548 = vmatpush1.msra.mxu0 0.0
        %1549 = vmatprep.subr.mxu0 0.0
        %1550 = vmatpush1.msra.mxu0 0.0
        %1551 = vmatprep.subr.mxu0 0.0
        %1552 = vmatpush1.msra.mxu0 0.0
        %1553 = vmatprep.subr.mxu0 0.0
        %1554 = vmatpush1.msra.mxu0 0.0
        %1555 = vmatprep.subr.mxu0 0.0
        %1556 = vmatpush1.msra.mxu0 0.0
        %1557 = vmatprep.mubr.f32.mxu0 0.0
        %1558 = vmatmul.mubr.f32.gmra.mrb[0].mxu0 %v1482
        %v1559 = vpop.f32.mrb[0].mxu0
        %v1560 = vadd.f32 %v1478, %v1559
        %v1561 = vpop.f32.mrb[0].mxu0
        %1562 = vmatprep.mubr.f32.mxu0 0.0
        %1563 = vmatmul.mubr.f32.gmra.mrb[0].mxu0 %v1485
        %v1564 = vpop.f32.mrb[0].mxu0
        %v1565 = vadd.f32 %v1478, %v1564
        %v1566 = vpop.f32.mrb[0].mxu0
        %1567 = vmatprep.mubr.f32.mxu0 0.0
        %1568 = vmatmul.mubr.f32.gmra.mrb[0].mxu0 %v1488
        %v1569 = vpop.f32.mrb[0].mxu0
        %v1570 = vadd.f32 %v1478, %v1569
        %v1571 = vpop.f32.mrb[0].mxu0
        %1572 = vmatprep.mubr.f32.mxu0 0.0
        %1573 = vmatmul.mubr.f32.gmra.mrb[0].mxu0 %v1491
        %v1574 = vpop.f32.mrb[0].mxu0
        %v1575 = vadd.f32 %v1478, %v1574
        %v1576 = vpop.f32.mrb[0].mxu0
        %1577 = vdwg.mxu0
        %1578 = vst [vmem:[%s439] sm:$0xff] %v1560
        %1579 = vst [vmem:[%s439 + $0x8] sm:$0xff] %v1565
        %1580 = vst [vmem:[%s439 + $0x10] sm:$0xff] %v1570
        %1581 = vst [vmem:[%s439 + $0x18] sm:$0xff] %v1575
        %s1582 = sand.u32 %s232, 1
        %s1583 = scalar_lea.sflag [#allocation6], %s1582
        %s1584 = sand.u32 %s232, 1
        %s1585 = smul.addr %s1584, 32
        %s1586 = scalar_lea.vmem [#allocation13], %s1585
        // Predicated region
        $region81: #{tpu_custom_call.1} parent=55 // pred_check
          %p1587 = pneg %p242
        $region82: #{tpu_custom_call.1} parent=55 // pred_check_branch
          %1589 = sbr.rel (%p1587) target = $region84
        $region83: #{tpu_custom_call.1} parent=55 // pred_region
          %s1590 = smul.u32 4, %s30
          %s1592 = ssub.s32 512, 512
          %1593 = vsyncadd %s1583, %s1592
          %s1594 = smul.addr %s1590, 128
          %s1595 = scalar_lea.hbm %s9, %s1594
          %s1596 = sshll.u32 %s1586, 4
          %s1597 = int_to_ptr.vmem [resolvable:$true] %s1596
          %1602 = dma.vmem_to_hbm [thread:$0]  %s1597, 512, %s1595, %s1583, 128, 128, 8
        $region84: #{tpu_custom_call.1} parent=55 // pred_fallthru
          _
        // Predicated region
        $region85: #{tpu_custom_call.1} parent=55 // pred_check
          %p1603 = pneg %p263
        $region86: #{tpu_custom_call.1} parent=55 // pred_check_branch
          %1605 = sbr.rel (%p1603) target = $region88
        $region87: #{tpu_custom_call.1} parent=55 // pred_region
          %s1607 = ssub.s32 128, 128
          %1608 = vsyncadd [#allocation15], %s1607
          %s1610 = sshll.u32 [#allocation14], 4
          %s1611 = int_to_ptr.vmem [resolvable:$true] %s1610
          %1613 = dma.vmem_to_hbm [thread:$0]  %s1611, 128, %s10, [#allocation15]
        $region88: #{tpu_custom_call.1} parent=55 // pred_fallthru
          _
        // Predicated region
        $region89: #{tpu_custom_call.1} parent=55 // pred_check
          %p1614 = pneg %p284
        $region90: #{tpu_custom_call.1} parent=55 // pred_check_branch
          %1616 = sbr.rel (%p1614) target = $region92
        $region91: #{tpu_custom_call.1} parent=55 // pred_region
          %s1618 = ssub.s32 128, 128
          %1619 = vsyncadd [#allocation15], %s1618
          %s1621 = sshll.u32 [#allocation16], 4
          %s1622 = int_to_ptr.vmem [resolvable:$true] %s1621
          %1624 = dma.vmem_to_hbm [thread:$0]  %s1622, 128, %s11, [#allocation15]
        $region92: #{tpu_custom_call.1} parent=55 // pred_fallthru
          _
        // Predicated region
        $region93: #{tpu_custom_call.1} parent=55 // pred_check
          %p1625 = pneg %p263
        $region94: #{tpu_custom_call.1} parent=55 // pred_check_branch
          %1627 = sbr.rel (%p1625) target = $region96
        $region95: #{tpu_custom_call.1} parent=55 // pred_region
          %1628 = dma.done [#allocation15], 128
        $region96: #{tpu_custom_call.1} parent=55 // pred_fallthru
          _
        // Predicated region
        $region97: #{tpu_custom_call.1} parent=55 // pred_check
          %p1629 = pneg %p284
        $region98: #{tpu_custom_call.1} parent=55 // pred_check_branch
          %1631 = sbr.rel (%p1629) target = $region100
        $region99: #{tpu_custom_call.1} parent=55 // pred_region
          %1632 = dma.done [#allocation15], 128
        $region100: #{tpu_custom_call.1} parent=55 // pred_fallthru
          _
      $region56: #{tpu_custom_call.1} parent=5 // pred_fallthru
        _
      %p1633 = scmp.le.s32.totalorder 2, %s25
      // Predicated region
      $region101: #{tpu_custom_call.1} parent=5 // pred_check
        %p1634 = pneg %p1633
      $region102: #{tpu_custom_call.1} parent=5 // pred_check_branch
        %1636 = sbr.rel (%p1634) target = $region104
      $region103: #{tpu_custom_call.1} parent=5 // pred_region
        %s1637 = ssub.s32 %s25, 2
        // Predicated region
        $region105: #{tpu_custom_call.1} parent=103 // pred_check
          %p1638 = pneg %p248
        $region106: #{tpu_custom_call.1} parent=103 // pred_check_branch
          %1640 = sbr.rel (%p1638) target = $region108
        $region107: #{tpu_custom_call.1} parent=103 // pred_region
          %s1641 = sand.u32 %s233, 1
          %s1642 = scalar_lea.sflag [#allocation6], %s1641
          %s1643 = sand.u32 %s233, 1
          %s1644 = smul.addr %s1643, 32
          %s1645 = scalar_lea.vmem [#allocation13], %s1644
          %1646 = dma.done %s1642, 512
        $region108: #{tpu_custom_call.1} parent=103 // pred_fallthru
          _
      $region104: #{tpu_custom_call.1} parent=5 // pred_fallthru
        _
    $region6: #{tpu_custom_call.1} parent=1 // loop_footer
      %s29 = sadd.s32 1, %s25
    $region7: #{tpu_custom_call.1} parent=1 // loop_footer_branch
      %24 = sbr.rel target = $region3
    $region8: #{tpu_custom_call.1} parent=1 // loop_exit
      _
    %1647 = vsyncpa [#allocation5], 1
    %s1648 = scalar_lea.sflag [#allocation5], 1
    %1649 = vsyncpa %s1648, 1
    %1650 = vsyncpa [#allocation8], 1
    %1651 = vsyncpa [#allocation11], 1
    %1652 = vsyncpa [#allocation6], 1
    %s1653 = scalar_lea.sflag [#allocation6], 1
    %1654 = vsyncpa %s1653, 1
    %1655 = vsyncpa [#allocation15], 1

</llo_original>
